<compile_context>
chip_gen: v7x
topology: tpu7x:2x2x1
jax: 0.10.0
libtpu: 0.0.40
codegen_flags: <defaults>
</compile_context>

<pallas_src>
import jax
import jax.numpy as jnp
from jax.experimental import pallas as pl
from jax.experimental.pallas import tpu as pltpu

# Architecture constants (match the PyTorch module defaults).
NUM_CHANNELS = 3
NUM_OUTPUTS = 10
C1_OUT, C2_OUT, KSIZE = 6, 12, 5
FC1_OUT = 84
FLAT_DIM = C2_OUT * 5 * 5          # 300

_BF16 = jnp.bfloat16


def _round_up(x, m):
    return (x + m - 1) // m * m


def _choose_m_tile(m, max_tile=512):
    """Pad M to a 128-multiple and pick a lane tile (prefer >=2 grid steps for v7x)."""
    mp = _round_up(m, 128)
    if mp <= 128:
        return mp, mp
    tm = min(max_tile, _round_up(mp // 2, 128))
    mp = _round_up(mp, tm)
    return mp, tm


# ------------------------------ Pallas kernels ------------------------------ #

def _conv_relu_pool_kernel(w_ref, b_ref, p_ref, o_ref):
    """Fused conv-as-GEMM + bias + ReLU + 2x2/stride-2 max-pool.

    w_ref: (Cp, Kp)      bf16   conv weights, rows = output channels
    b_ref: (Cp, 1)       f32    bias
    p_ref: (4, Kp, TM)   bf16   im2col patches, one slab per pool-window tap
    o_ref: (Cp, TM)      f32    pooled activations, lanes = (ph, pw, b)

    max_tap relu(W@P_tap + b) == relu(max_tap(W@P_tap) + b)   (shared bias, relu monotone)
    """
    w = w_ref[...]
    acc = jnp.dot(w, p_ref[0], preferred_element_type=jnp.float32)
    for tap in range(1, 4):
        acc = jnp.maximum(acc, jnp.dot(w, p_ref[tap],
                                       preferred_element_type=jnp.float32))
    o_ref[...] = jnp.maximum(acc + b_ref[...], 0.0).astype(o_ref.dtype)


def _fc_head_kernel(w1_ref, b1_ref, w2_ref, b2_ref, x_ref, o_ref):
    """Fused fc1 + ReLU + fc2, intermediate (84, B) kept on-chip (no HBM round-trip).

    w1_ref: (H1p, Kp) bf16   b1_ref: (H1p, 1) f32
    w2_ref: (Op, H1p) bf16   b2_ref: (Op, 1)  f32
    x_ref:  (Kp, Bp)  bf16   o_ref:  (Op, Bp) f32
    """
    h = jnp.dot(w1_ref[...], x_ref[...], preferred_element_type=jnp.float32)
    h = jnp.maximum(h + b1_ref[...], 0.0)
    out = jnp.dot(w2_ref[...], h.astype(w2_ref.dtype),
                  preferred_element_type=jnp.float32)
    o_ref[...] = (out + b2_ref[...]).astype(o_ref.dtype)


# ------------------------- wrappers around pallas_call ----------------------- #

def _pool_patches(x_chwb, k):
    """(C, H, W, B) -> (4, C*k*k, PH*PW*B) bf16 patches.

    Tap index = 2*di + dj over the 2x2 pool window; K order (c, kh, kw);
    M (lane) order (ph, pw, b).
    """
    C, H, W, B = x_chwb.shape
    PH, PW = (H - k + 1) // 2, (W - k + 1) // 2
    taps = []
    for di in (0, 1):
        for dj in (0, 1):
            sl = [x_chwb[:, di + i: di + i + 2 * PH: 2,
                         dj + j: dj + j + 2 * PW: 2, :]
                  for i in range(k) for j in range(k)]           # each (C, PH, PW, B)
            p = jnp.stack(sl, axis=1)                            # (C, k*k, PH, PW, B)
            taps.append(p.reshape(C * k * k, PH * PW * B))
    return jnp.stack(taps, axis=0).astype(_BF16)                 # (4, K, M)


def conv_relu_pool(x_chwb, w_p, b_p, cout):
    """One fused conv(5x5, valid) + bias + ReLU + maxpool(2,2) stage.

    x_chwb: (C, H, W, B) f32 -> (cout, PH, PW, B) f32.
    """
    C, H, W, B = x_chwb.shape
    PH, PW = (H - KSIZE + 1) // 2, (W - KSIZE + 1) // 2
    M = PH * PW * B
    Cp, Kp = w_p.shape

    # TODO(synk): at production batch sizes, gather patches in-kernel from an
    # HBM-resident input instead of materializing the 25x im2col expansion here;
    # at B=2 the patch matrix is <1 MiB so XLA glue is the simpler choice.
    patches = _pool_patches(x_chwb, KSIZE)                       # (4, C*25, M)
    Mp, TM = _choose_m_tile(M)
    patches = jnp.pad(patches,
                      ((0, 0), (0, Kp - C * KSIZE * KSIZE), (0, Mp - M)))

    out = pl.pallas_call(
        _conv_relu_pool_kernel,
        out_shape=jax.ShapeDtypeStruct((Cp, Mp), jnp.float32),
        grid=(Mp // TM,),
        in_specs=[
            pl.BlockSpec((Cp, Kp), lambda i: (0, 0)),
            pl.BlockSpec((Cp, 1), lambda i: (0, 0)),
            pl.BlockSpec((4, Kp, TM), lambda i: (0, 0, i)),
        ],
        out_specs=pl.BlockSpec((Cp, TM), lambda i: (0, i)),
        compiler_params=pltpu.CompilerParams(
            dimension_semantics=("parallel",)),
    )(w_p, b_p, patches)
    return out[:cout, :M].reshape(cout, PH, PW, B)


def fc_head(flat_t, w1_p, b1_p, w2_p, b2_p):
    """Fused fc1+ReLU+fc2. flat_t: (300, B) f32 -> logits (B, 10) f32."""
    K, B = flat_t.shape
    H1p, Kp = w1_p.shape                       # (128, 384)
    Op = w2_p.shape[0]                         # 16
    Bp = _round_up(B, 8)
    x = jnp.pad(flat_t, ((0, Kp - K), (0, Bp - B))).astype(_BF16)

    out = pl.pallas_call(
        _fc_head_kernel,
        out_shape=jax.ShapeDtypeStruct((Op, Bp), jnp.float32),
        grid=(1,),
        in_specs=[
            pl.BlockSpec((H1p, Kp), lambda i: (0, 0)),
            pl.BlockSpec((H1p, 1), lambda i: (0, 0)),
            pl.BlockSpec((Op, H1p), lambda i: (0, 0)),
            pl.BlockSpec((Op, 1), lambda i: (0, 0)),
            pl.BlockSpec((Kp, Bp), lambda i: (0, 0)),
        ],
        out_specs=pl.BlockSpec((Op, Bp), lambda i: (0, 0)),
        compiler_params=pltpu.CompilerParams(
            dimension_semantics=("arbitrary",)),
    )(w1_p, b1_p, w2_p, b2_p, x)
    return out[:NUM_OUTPUTS, :B].T


# --------------------------------- params ----------------------------------- #

def init_params(key, num_channels=NUM_CHANNELS, num_outputs=NUM_OUTPUTS):
    """PyTorch-style uniform(-1/sqrt(fan_in), 1/sqrt(fan_in)) init, all f32."""
    ks = jax.random.split(key, 8)

    def u(k, shape, fan_in):
        bound = 1.0 / jnp.sqrt(jnp.float32(fan_in))
        return jax.random.uniform(k, shape, jnp.float32, -bound, bound)

    return {
        "w1": u(ks[0], (C1_OUT, num_channels, KSIZE, KSIZE), num_channels * KSIZE**2),
        "b1": u(ks[1], (C1_OUT,), num_channels * KSIZE**2),
        "w2": u(ks[2], (C2_OUT, C1_OUT, KSIZE, KSIZE), C1_OUT * KSIZE**2),
        "b2": u(ks[3], (C2_OUT,), C1_OUT * KSIZE**2),
        "fc1_w": u(ks[4], (FC1_OUT, FLAT_DIM), FLAT_DIM),
        "fc1_b": u(ks[5], (FC1_OUT,), FLAT_DIM),
        "fc2_w": u(ks[6], (num_outputs, FC1_OUT), FC1_OUT),
        "fc2_b": u(ks[7], (num_outputs,), FC1_OUT),
    }


def preprocess_params(params):
    """Hoisted out of the jitted forward: reshape conv weights to (Cout, Cin*kh*kw),
    zero-pad everything to (8,128)-friendly shapes, cast matmul operands to bf16."""
    def pad2(a, rows, cols):
        return jnp.pad(a, ((0, rows - a.shape[0]), (0, cols - a.shape[1])))

    def pad_bias(b, rows):
        return jnp.pad(b, (0, rows - b.shape[0])).reshape(rows, 1).astype(jnp.float32)

    w1 = params["w1"].reshape(params["w1"].shape[0], -1)          # (6, 75)
    w2 = params["w2"].reshape(params["w2"].shape[0], -1)          # (12, 150)
    h1p = _round_up(FC1_OUT, 128)                                 # 128
    return {
        "w1": pad2(w1, _round_up(w1.shape[0], 16), _round_up(w1.shape[1], 128)).astype(_BF16),
        "b1": pad_bias(params["b1"], _round_up(w1.shape[0], 16)),
        "w2": pad2(w2, _round_up(w2.shape[0], 16), _round_up(w2.shape[1], 128)).astype(_BF16),
        "b2": pad_bias(params["b2"], _round_up(w2.shape[0], 16)),
        "fc1_w": pad2(params["fc1_w"], h1p, _round_up(FLAT_DIM, 128)).astype(_BF16),
        "fc1_b": pad_bias(params["fc1_b"], h1p),
        "fc2_w": pad2(params["fc2_w"], _round_up(NUM_OUTPUTS, 16), h1p).astype(_BF16),
        "fc2_b": pad_bias(params["fc2_b"], _round_up(NUM_OUTPUTS, 16)),
    }


# --------------------------------- forward ----------------------------------- #

@jax.jit
def convnet_forward(prep, x_nchw):
    """Matches ConvNetComplex.forward; x_nchw: (B, 3, 32, 32) f32 -> (B, 10) f32."""
    x = jnp.transpose(x_nchw, (1, 2, 3, 0))                   # (C, H, W, B)
    y1 = conv_relu_pool(x, prep["w1"], prep["b1"], C1_OUT)    # (6, 14, 14, B)
    y2 = conv_relu_pool(y1, prep["w2"], prep["b2"], C2_OUT)   # (12, 5, 5, B)
    flat_t = y2.reshape(FLAT_DIM, x_nchw.shape[0])            # torch flatten order / column
    return fc_head(flat_t, prep["fc1_w"], prep["fc1_b"],
                   prep["fc2_w"], prep["fc2_b"])


def reference_forward(params, x_nchw):
    """Pure-JAX f32 reference (XLA conv / matmul) for a tolerance check."""
    def conv(x, w, b):
        y = jax.lax.conv_general_dilated(
            x, w, window_strides=(1, 1), padding="VALID",
            dimension_numbers=("NCHW", "OIHW", "NCHW"))
        return y + b.reshape(1, -1, 1, 1)

    def pool(y):
        b, c, h, w = y.shape
        return y.reshape(b, c, h // 2, 2, w // 2, 2).max(axis=(3, 5))

    y = pool(jnp.maximum(conv(x_nchw, params["w1"], params["b1"]), 0.0))
    y = pool(jnp.maximum(conv(y, params["w2"], params["b2"]), 0.0))
    y = y.reshape(y.shape[0], -1)
    y = jnp.maximum(y @ params["fc1_w"].T + params["fc1_b"], 0.0)
    return y @ params["fc2_w"].T + params["fc2_b"]


if __name__ == "__main__":
    key = jax.random.PRNGKey(0)
    k_params, k_x = jax.random.split(key)
    params = init_params(k_params)
    prep = preprocess_params(params)            # once, outside the jitted forward
    # 32x32x3 input is required so conv/pool/conv/pool -> 12*5*5 matches fc1.
    x = jax.random.normal(k_x, (2, NUM_CHANNELS, 32, 32), dtype=jnp.float32)

    y = jax.block_until_ready(convnet_forward(prep, x))
    assert y.shape == (2, NUM_OUTPUTS) and y.dtype == jnp.float32

    y_ref = jax.block_until_ready(reference_forward(params, x))
    err = float(jnp.max(jnp.abs(y - y_ref)))
    # bf16 matmul inputs with f32 accumulation vs f32 reference -> loose tolerance.
    assert err < 0.1, f"max abs error vs reference: {err}"
    print("KERNEL_OK")
</pallas_src>

<mosaic_0001>
module attributes {stable_mosaic.version = 11 : i64} {
  func.func @_conv_relu_pool_kernel(%arg0: i32, %arg1: memref<16x128xbf16, #tpu.memory_space<vmem>>, %arg2: memref<16x1xf32, #tpu.memory_space<vmem>>, %arg3: memref<4x128x256xbf16, #tpu.memory_space<vmem>>, %arg4: memref<16x256xf32, #tpu.memory_space<vmem>>) attributes {dimension_semantics = [#tpu.dimension_semantics<parallel>], iteration_bounds = array<i64: 2>, scalar_prefetch = 0 : i64, scratch_operands = 0 : i64, tpu.core_type = #tpu.core_type<tc>, window_params = [{pipeline_mode = #tpu.pipeline_mode<synchronous>, transform_indices = @transform_0, window_bounds = array<i64: 16, 128>}, {pipeline_mode = #tpu.pipeline_mode<synchronous>, transform_indices = @transform_1, window_bounds = array<i64: 16, 1>}, {transform_indices = @transform_2, window_bounds = array<i64: 4, 128, 256>}, {transform_indices = @transform_3, window_bounds = array<i64: 16, 256>}]} {
    %c0 = arith.constant 0 : index
    %c0_0 = arith.constant 0 : index
    %0 = vector.load %arg1[%c0, %c0_0] : memref<16x128xbf16, #tpu.memory_space<vmem>>, vector<16x128xbf16>
    %c0_1 = arith.constant 0 : index
    %c0_2 = arith.constant 0 : index
    %c0_3 = arith.constant 0 : index
    %1 = vector.load %arg3[%c0_1, %c0_2, %c0_3] : memref<4x128x256xbf16, #tpu.memory_space<vmem>>, vector<1x128x256xbf16>
    %2 = vector.shape_cast %1 : vector<1x128x256xbf16> to vector<128x256xbf16>
    %cst = arith.constant dense<0.000000e+00> : vector<16x256xf32>
    %3 = tpu.matmul %0, %2, %cst {dimension_numbers = #tpu.dot_dimension_numbers<[1], [0], [0], [1], [0, 0, 1, 1], [], []>} : vector<16x128xbf16>, vector<128x256xbf16>, vector<16x256xf32> -> vector<16x256xf32>
    %c1 = arith.constant 1 : index
    %c0_4 = arith.constant 0 : index
    %c0_5 = arith.constant 0 : index
    %4 = vector.load %arg3[%c1, %c0_4, %c0_5] : memref<4x128x256xbf16, #tpu.memory_space<vmem>>, vector<1x128x256xbf16>
    %5 = vector.shape_cast %4 : vector<1x128x256xbf16> to vector<128x256xbf16>
    %cst_6 = arith.constant dense<0.000000e+00> : vector<16x256xf32>
    %6 = tpu.matmul %0, %5, %cst_6 {dimension_numbers = #tpu.dot_dimension_numbers<[1], [0], [0], [1], [0, 0, 1, 1], [], []>} : vector<16x128xbf16>, vector<128x256xbf16>, vector<16x256xf32> -> vector<16x256xf32>
    %7 = arith.maximumf %3, %6 : vector<16x256xf32>
    %c2 = arith.constant 2 : index
    %c0_7 = arith.constant 0 : index
    %c0_8 = arith.constant 0 : index
    %8 = vector.load %arg3[%c2, %c0_7, %c0_8] : memref<4x128x256xbf16, #tpu.memory_space<vmem>>, vector<1x128x256xbf16>
    %9 = vector.shape_cast %8 : vector<1x128x256xbf16> to vector<128x256xbf16>
    %cst_9 = arith.constant dense<0.000000e+00> : vector<16x256xf32>
    %10 = tpu.matmul %0, %9, %cst_9 {dimension_numbers = #tpu.dot_dimension_numbers<[1], [0], [0], [1], [0, 0, 1, 1], [], []>} : vector<16x128xbf16>, vector<128x256xbf16>, vector<16x256xf32> -> vector<16x256xf32>
    %11 = arith.maximumf %7, %10 : vector<16x256xf32>
    %c3 = arith.constant 3 : index
    %c0_10 = arith.constant 0 : index
    %c0_11 = arith.constant 0 : index
    %12 = vector.load %arg3[%c3, %c0_10, %c0_11] : memref<4x128x256xbf16, #tpu.memory_space<vmem>>, vector<1x128x256xbf16>
    %13 = vector.shape_cast %12 : vector<1x128x256xbf16> to vector<128x256xbf16>
    %cst_12 = arith.constant dense<0.000000e+00> : vector<16x256xf32>
    %14 = tpu.matmul %0, %13, %cst_12 {dimension_numbers = #tpu.dot_dimension_numbers<[1], [0], [0], [1], [0, 0, 1, 1], [], []>} : vector<16x128xbf16>, vector<128x256xbf16>, vector<16x256xf32> -> vector<16x256xf32>
    %15 = arith.maximumf %11, %14 : vector<16x256xf32>
    %c0_13 = arith.constant 0 : index
    %c0_14 = arith.constant 0 : index
    %16 = vector.load %arg2[%c0_13, %c0_14] : memref<16x1xf32, #tpu.memory_space<vmem>>, vector<16x1xf32>
    %17 = vector.broadcast %16 : vector<16x1xf32> to vector<16x256xf32>
    %18 = arith.addf %15, %17 : vector<16x256xf32>
    %cst_15 = arith.constant 0.000000e+00 : f32
    %19 = vector.broadcast %cst_15 : f32 to vector<16x256xf32>
    %20 = arith.maximumf %18, %19 : vector<16x256xf32>
    %c0_16 = arith.constant 0 : index
    %c0_17 = arith.constant 0 : index
    %21 = vector.load %arg4[%c0_16, %c0_17] : memref<16x256xf32, #tpu.memory_space<vmem>>, vector<16x256xf32>
    tpu.vector_store %arg4[%c0_16, %c0_17], %20 {strides = array<i32>} : memref<16x256xf32, #tpu.memory_space<vmem>>, vector<16x256xf32>,
    return
  }
  func.func @transform_0(%arg0: i32) -> (i32, i32) {
    %c0_i32 = arith.constant 0 : i32
    %c0_i32_0 = arith.constant 0 : i32
    %c0_i32_1 = arith.constant 0 : i32
    return %c0_i32, %c0_i32_0 : i32, i32
  }
  func.func @transform_1(%arg0: i32) -> (i32, i32) {
    %c0_i32 = arith.constant 0 : i32
    %c0_i32_0 = arith.constant 0 : i32
    %c0_i32_1 = arith.constant 0 : i32
    return %c0_i32, %c0_i32_0 : i32, i32
  }
  func.func @transform_2(%arg0: i32) -> (i32, i32, i32) {
    %c0_i32 = arith.constant 0 : i32
    %c0_i32_0 = arith.constant 0 : i32
    %c0_i32_1 = arith.constant 0 : i32
    return %c0_i32, %c0_i32_0, %arg0 : i32, i32, i32
  }
  func.func @transform_3(%arg0: i32) -> (i32, i32) {
    %c0_i32 = arith.constant 0 : i32
    %c0_i32_0 = arith.constant 0 : i32
    return %c0_i32, %arg0 : i32, i32
  }
}

module attributes {stable_mosaic.version = 11 : i64} {
  func.func @_conv_relu_pool_kernel(%arg0: i32, %arg1: memref<16x256xbf16, #tpu.memory_space<vmem>>, %arg2: memref<16x1xf32, #tpu.memory_space<vmem>>, %arg3: memref<4x256x128xbf16, #tpu.memory_space<vmem>>, %arg4: memref<16x128xf32, #tpu.memory_space<vmem>>) attributes {dimension_semantics = [#tpu.dimension_semantics<parallel>], iteration_bounds = array<i64: 1>, scalar_prefetch = 0 : i64, scratch_operands = 0 : i64, tpu.core_type = #tpu.core_type<tc>, window_params = [{pipeline_mode = #tpu.pipeline_mode<synchronous>, transform_indices = @transform_0, window_bounds = array<i64: 16, 256>}, {pipeline_mode = #tpu.pipeline_mode<synchronous>, transform_indices = @transform_1, window_bounds = array<i64: 16, 1>}, {transform_indices = @transform_2, window_bounds = array<i64: 4, 256, 128>}, {transform_indices = @transform_3, window_bounds = array<i64: 16, 128>}]} {
    %c0 = arith.constant 0 : index
    %c0_0 = arith.constant 0 : index
    %0 = vector.load %arg1[%c0, %c0_0] : memref<16x256xbf16, #tpu.memory_space<vmem>>, vector<16x256xbf16>
    %c0_1 = arith.constant 0 : index
    %c0_2 = arith.constant 0 : index
    %c0_3 = arith.constant 0 : index
    %1 = vector.load %arg3[%c0_1, %c0_2, %c0_3] : memref<4x256x128xbf16, #tpu.memory_space<vmem>>, vector<1x256x128xbf16>
    %2 = vector.shape_cast %1 : vector<1x256x128xbf16> to vector<256x128xbf16>
    %cst = arith.constant dense<0.000000e+00> : vector<16x128xf32>
    %3 = tpu.matmul %0, %2, %cst {dimension_numbers = #tpu.dot_dimension_numbers<[1], [0], [0], [1], [0, 0, 1, 1], [], []>} : vector<16x256xbf16>, vector<256x128xbf16>, vector<16x128xf32> -> vector<16x128xf32>
    %c1 = arith.constant 1 : index
    %c0_4 = arith.constant 0 : index
    %c0_5 = arith.constant 0 : index
    %4 = vector.load %arg3[%c1, %c0_4, %c0_5] : memref<4x256x128xbf16, #tpu.memory_space<vmem>>, vector<1x256x128xbf16>
    %5 = vector.shape_cast %4 : vector<1x256x128xbf16> to vector<256x128xbf16>
    %cst_6 = arith.constant dense<0.000000e+00> : vector<16x128xf32>
    %6 = tpu.matmul %0, %5, %cst_6 {dimension_numbers = #tpu.dot_dimension_numbers<[1], [0], [0], [1], [0, 0, 1, 1], [], []>} : vector<16x256xbf16>, vector<256x128xbf16>, vector<16x128xf32> -> vector<16x128xf32>
    %7 = arith.maximumf %3, %6 : vector<16x128xf32>
    %c2 = arith.constant 2 : index
    %c0_7 = arith.constant 0 : index
    %c0_8 = arith.constant 0 : index
    %8 = vector.load %arg3[%c2, %c0_7, %c0_8] : memref<4x256x128xbf16, #tpu.memory_space<vmem>>, vector<1x256x128xbf16>
    %9 = vector.shape_cast %8 : vector<1x256x128xbf16> to vector<256x128xbf16>
    %cst_9 = arith.constant dense<0.000000e+00> : vector<16x128xf32>
    %10 = tpu.matmul %0, %9, %cst_9 {dimension_numbers = #tpu.dot_dimension_numbers<[1], [0], [0], [1], [0, 0, 1, 1], [], []>} : vector<16x256xbf16>, vector<256x128xbf16>, vector<16x128xf32> -> vector<16x128xf32>
    %11 = arith.maximumf %7, %10 : vector<16x128xf32>
    %c3 = arith.constant 3 : index
    %c0_10 = arith.constant 0 : index
    %c0_11 = arith.constant 0 : index
    %12 = vector.load %arg3[%c3, %c0_10, %c0_11] : memref<4x256x128xbf16, #tpu.memory_space<vmem>>, vector<1x256x128xbf16>
    %13 = vector.shape_cast %12 : vector<1x256x128xbf16> to vector<256x128xbf16>
    %cst_12 = arith.constant dense<0.000000e+00> : vector<16x128xf32>
    %14 = tpu.matmul %0, %13, %cst_12 {dimension_numbers = #tpu.dot_dimension_numbers<[1], [0], [0], [1], [0, 0, 1, 1], [], []>} : vector<16x256xbf16>, vector<256x128xbf16>, vector<16x128xf32> -> vector<16x128xf32>
    %15 = arith.maximumf %11, %14 : vector<16x128xf32>
    %c0_13 = arith.constant 0 : index
    %c0_14 = arith.constant 0 : index
    %16 = vector.load %arg2[%c0_13, %c0_14] : memref<16x1xf32, #tpu.memory_space<vmem>>, vector<16x1xf32>
    %17 = vector.broadcast %16 : vector<16x1xf32> to vector<16x128xf32>
    %18 = arith.addf %15, %17 : vector<16x128xf32>
    %cst_15 = arith.constant 0.000000e+00 : f32
    %19 = vector.broadcast %cst_15 : f32 to vector<16x128xf32>
    %20 = arith.maximumf %18, %19 : vector<16x128xf32>
    %c0_16 = arith.constant 0 : index
    %c0_17 = arith.constant 0 : index
    %21 = vector.load %arg4[%c0_16, %c0_17] : memref<16x128xf32, #tpu.memory_space<vmem>>, vector<16x128xf32>
    tpu.vector_store %arg4[%c0_16, %c0_17], %20 {strides = array<i32>} : memref<16x128xf32, #tpu.memory_space<vmem>>, vector<16x128xf32>,
    return
  }
  func.func @transform_0(%arg0: i32) -> (i32, i32) {
    %c0_i32 = arith.constant 0 : i32
    %c0_i32_0 = arith.constant 0 : i32
    %c0_i32_1 = arith.constant 0 : i32
    return %c0_i32, %c0_i32_0 : i32, i32
  }
  func.func @transform_1(%arg0: i32) -> (i32, i32) {
    %c0_i32 = arith.constant 0 : i32
    %c0_i32_0 = arith.constant 0 : i32
    %c0_i32_1 = arith.constant 0 : i32
    return %c0_i32, %c0_i32_0 : i32, i32
  }
  func.func @transform_2(%arg0: i32) -> (i32, i32, i32) {
    %c0_i32 = arith.constant 0 : i32
    %c0_i32_0 = arith.constant 0 : i32
    %c0_i32_1 = arith.constant 0 : i32
    return %c0_i32, %c0_i32_0, %arg0 : i32, i32, i32
  }
  func.func @transform_3(%arg0: i32) -> (i32, i32) {
    %c0_i32 = arith.constant 0 : i32
    %c0_i32_0 = arith.constant 0 : i32
    return %c0_i32, %arg0 : i32, i32
  }
}

module attributes {stable_mosaic.version = 11 : i64} {
  func.func @_fc_head_kernel(%arg0: i32, %arg1: memref<128x384xbf16, #tpu.memory_space<vmem>>, %arg2: memref<128x1xf32, #tpu.memory_space<vmem>>, %arg3: memref<16x128xbf16, #tpu.memory_space<vmem>>, %arg4: memref<16x1xf32, #tpu.memory_space<vmem>>, %arg5: memref<384x8xbf16, #tpu.memory_space<vmem>>, %arg6: memref<16x8xf32, #tpu.memory_space<vmem>>) attributes {dimension_semantics = [#tpu.dimension_semantics<arbitrary>], iteration_bounds = array<i64: 1>, scalar_prefetch = 0 : i64, scratch_operands = 0 : i64, tpu.core_type = #tpu.core_type<tc>, window_params = [{pipeline_mode = #tpu.pipeline_mode<synchronous>, transform_indices = @transform_0, window_bounds = array<i64: 128, 384>}, {pipeline_mode = #tpu.pipeline_mode<synchronous>, transform_indices = @transform_1, window_bounds = array<i64: 128, 1>}, {pipeline_mode = #tpu.pipeline_mode<synchronous>, transform_indices = @transform_2, window_bounds = array<i64: 16, 128>}, {pipeline_mode = #tpu.pipeline_mode<synchronous>, transform_indices = @transform_3, window_bounds = array<i64: 16, 1>}, {pipeline_mode = #tpu.pipeline_mode<synchronous>, transform_indices = @transform_4, window_bounds = array<i64: 384, 8>}, {pipeline_mode = #tpu.pipeline_mode<synchronous>, transform_indices = @transform_5, window_bounds = array<i64: 16, 8>}]} {
    %c0 = arith.constant 0 : index
    %c0_0 = arith.constant 0 : index
    %0 = vector.load %arg1[%c0, %c0_0] : memref<128x384xbf16, #tpu.memory_space<vmem>>, vector<128x384xbf16>
    %c0_1 = arith.constant 0 : index
    %c0_2 = arith.constant 0 : index
    %1 = vector.load %arg5[%c0_1, %c0_2] : memref<384x8xbf16, #tpu.memory_space<vmem>>, vector<384x8xbf16>
    %cst = arith.constant dense<0.000000e+00> : vector<128x8xf32>
    %2 = tpu.matmul %0, %1, %cst {dimension_numbers = #tpu.dot_dimension_numbers<[1], [0], [0], [1], [0, 0, 1, 1], [], []>} : vector<128x384xbf16>, vector<384x8xbf16>, vector<128x8xf32> -> vector<128x8xf32>
    %c0_3 = arith.constant 0 : index
    %c0_4 = arith.constant 0 : index
    %3 = vector.load %arg2[%c0_3, %c0_4] : memref<128x1xf32, #tpu.memory_space<vmem>>, vector<128x1xf32>
    %4 = vector.broadcast %3 : vector<128x1xf32> to vector<128x8xf32>
    %5 = arith.addf %2, %4 : vector<128x8xf32>
    %cst_5 = arith.constant 0.000000e+00 : f32
    %6 = vector.broadcast %cst_5 : f32 to vector<128x8xf32>
    %7 = arith.maximumf %5, %6 : vector<128x8xf32>
    %c0_6 = arith.constant 0 : index
    %c0_7 = arith.constant 0 : index
    %8 = vector.load %arg3[%c0_6, %c0_7] : memref<16x128xbf16, #tpu.memory_space<vmem>>, vector<16x128xbf16>
    %9 = arith.truncf %7 : vector<128x8xf32> to vector<128x8xbf16>
    %cst_8 = arith.constant dense<0.000000e+00> : vector<16x8xf32>
    %10 = tpu.matmul %8, %9, %cst_8 {dimension_numbers = #tpu.dot_dimension_numbers<[1], [0], [0], [1], [0, 0, 1, 1], [], []>} : vector<16x128xbf16>, vector<128x8xbf16>, vector<16x8xf32> -> vector<16x8xf32>
    %c0_9 = arith.constant 0 : index
    %c0_10 = arith.constant 0 : index
    %11 = vector.load %arg4[%c0_9, %c0_10] : memref<16x1xf32, #tpu.memory_space<vmem>>, vector<16x1xf32>
    %12 = vector.broadcast %11 : vector<16x1xf32> to vector<16x8xf32>
    %13 = arith.addf %10, %12 : vector<16x8xf32>
    %c0_11 = arith.constant 0 : index
    %c0_12 = arith.constant 0 : index
    %14 = vector.load %arg6[%c0_11, %c0_12] : memref<16x8xf32, #tpu.memory_space<vmem>>, vector<16x8xf32>
    tpu.vector_store %arg6[%c0_11, %c0_12], %13 {strides = array<i32>} : memref<16x8xf32, #tpu.memory_space<vmem>>, vector<16x8xf32>,
    return
  }
  func.func @transform_0(%arg0: i32) -> (i32, i32) {
    %c0_i32 = arith.constant 0 : i32
    %c0_i32_0 = arith.constant 0 : i32
    %c0_i32_1 = arith.constant 0 : i32
    return %c0_i32, %c0_i32_0 : i32, i32
  }
  func.func @transform_1(%arg0: i32) -> (i32, i32) {
    %c0_i32 = arith.constant 0 : i32
    %c0_i32_0 = arith.constant 0 : i32
    %c0_i32_1 = arith.constant 0 : i32
    return %c0_i32, %c0_i32_0 : i32, i32
  }
  func.func @transform_2(%arg0: i32) -> (i32, i32) {
    %c0_i32 = arith.constant 0 : i32
    %c0_i32_0 = arith.constant 0 : i32
    %c0_i32_1 = arith.constant 0 : i32
    return %c0_i32, %c0_i32_0 : i32, i32
  }
  func.func @transform_3(%arg0: i32) -> (i32, i32) {
    %c0_i32 = arith.constant 0 : i32
    %c0_i32_0 = arith.constant 0 : i32
    %c0_i32_1 = arith.constant 0 : i32
    return %c0_i32, %c0_i32_0 : i32, i32
  }
  func.func @transform_4(%arg0: i32) -> (i32, i32) {
    %c0_i32 = arith.constant 0 : i32
    %c0_i32_0 = arith.constant 0 : i32
    %c0_i32_1 = arith.constant 0 : i32
    return %c0_i32, %c0_i32_0 : i32, i32
  }
  func.func @transform_5(%arg0: i32) -> (i32, i32) {
    %c0_i32 = arith.constant 0 : i32
    %c0_i32_0 = arith.constant 0 : i32
    %c0_i32_1 = arith.constant 0 : i32
    return %c0_i32, %c0_i32_0 : i32, i32
  }
}

</mosaic_0001>

<llo_original>
// kernel: convnet_forward.3
$region0: #{convnet_forward.3}
  #allocation0 [shape = 'u32[]', space=smem, size = 0x4, offset = 0x4, fixed_abs, tag = 'smem constant byte address 0x4 - core index']
  #allocation1 [shape = 'u32[144,128]{1,0:T(1,128)}', space=vmem, size = 0x12000, scoped, tag = 'internal scratch']
  %s0 = inlined_call_operand.vmem [shape: bf16[16,128], index: 0, kind: input, shape index: {}]
  %s1 = inlined_call_operand.vmem [shape: f32[16,1], index: 1, kind: input, shape index: {}]
  %s2 = inlined_call_operand.vmem [shape: bf16[4,128,512], index: 2, kind: input, shape index: {}]
  %s3 = inlined_call_operand.vmem [shape: f32[16,512], index: 3, kind: output, shape index: {}]
  %s4 = sld [smem:[#allocation0]]
  $region102: #{convnet_forward.3} parent=0
    _
  %s6 = ssub.s32 1, %s4
  %s7 = scalar_select 0, %s6, %s4
  $region1: #{convnet_forward.3} parent=0
    #allocation2 [shape = 'u8[524288]{0}', space=vmem, size = 0x80000, scoped, tag = 'input window, operand 2']
    #allocation3 [shape = 'u8[32768]{0}', space=vmem, size = 0x8000, scoped, tag = 'output window, operand 0']
    loop: start=0, step=1, limit=4
    $region2: #{convnet_forward.3} parent=1 // loop_pre_header
      _
    $region3: #{convnet_forward.3} parent=1 // loop_header
      %s9 = sphi 0, %s13
      %p10 = scmp.ge.s32.totalorder %s9, 4
      %s17 = sphi 0, %s17
      %s19 = sphi 0, %s17
      %s20 = sphi 0, %s19
      %s34 = sphi 0, %s20
      %s38 = sphi 0, %s38
      %s40 = sphi 0, %s38
      %s41 = sphi 0, %s40
      %s55 = sphi 0, %s41
      %s61 = sphi 0, %s63
      %s64 = sphi 0, %s61
      %s65 = sphi 0, %s64
      %s81 = sphi 0, %s65
      %s87 = sphi 0, %s89
      %s90 = sphi 0, %s87
      %s91 = sphi 0, %s90
      %s107 = sphi 0, %s91
    $region4: #{convnet_forward.3} parent=1 // loop_header_branch
      %12 = sbr.rel (%p10) target = $region8
    $region5: #{convnet_forward.3} parent=1 // loop_body
      %s14 = ssub.s32 %s9, 1
      %s15 = ssub.s32 %s9, 2
      %s16 = sadd.s32 %s9, 1
      %s18 = sadd.s32 %s17, 1
      %p21 = scmp.eq.s32.totalorder %s9, 1
      %p22 = scmp.ne.s32.totalorder %s17, %s19
      %p23 = scmp.eq.s32.totalorder %s9, 0
      %p24 = por %p22, %p23
      %p25 = scmp.ne.s32.totalorder %s17, %s19
      %p26 = scmp.eq.s32.totalorder %s14, 1
      %p27 = por %p25, %p26
      %p28 = scmp.ne.s32.totalorder %s19, %s20
      %p29 = scmp.eq.s32.totalorder %s14, 0
      %p30 = por %p28, %p29
      %p31 = scmp.ne.s32.totalorder %s19, %s20
      %p32 = scmp.eq.s32.totalorder %s15, 1
      %p33 = por %p31, %p32
      %p35 = scmp.ne.s32.totalorder %s20, %s34
      %p36 = scmp.eq.s32.totalorder %s15, 0
      %p37 = por %p35, %p36
      %s39 = sadd.s32 %s38, 1
      %p42 = scmp.eq.s32.totalorder %s9, 1
      %p43 = scmp.ne.s32.totalorder %s38, %s40
      %p44 = scmp.eq.s32.totalorder %s9, 0
      %p45 = por %p43, %p44
      %p46 = scmp.ne.s32.totalorder %s38, %s40
      %p47 = scmp.eq.s32.totalorder %s14, 1
      %p48 = por %p46, %p47
      %p49 = scmp.ne.s32.totalorder %s40, %s41
      %p50 = scmp.eq.s32.totalorder %s14, 0
      %p51 = por %p49, %p50
      %p52 = scmp.ne.s32.totalorder %s40, %s41
      %p53 = scmp.eq.s32.totalorder %s15, 1
      %p54 = por %p52, %p53
      %p56 = scmp.ne.s32.totalorder %s41, %s55
      %p57 = scmp.eq.s32.totalorder %s15, 0
      %p58 = por %p56, %p57
      %s59 = ssub.s32 %s9, %s16
      %p60 = scmp.eq.s32.totalorder %s59, 0
      %s62 = sadd.s32 %s61, 1
      %s63 = scalar_select %p60, %s61, %s62
      %p66 = pneg %p60
      %p67 = scmp.eq.s32.totalorder %s9, 1
      %p68 = por %p66, %p67
      %p69 = scmp.ne.s32.totalorder %s61, %s64
      %p70 = scmp.eq.s32.totalorder %s9, 0
      %p71 = por %p69, %p70
      %p72 = scmp.ne.s32.totalorder %s61, %s64
      %p73 = scmp.eq.s32.totalorder %s14, 1
      %p74 = por %p72, %p73
      %p75 = scmp.ne.s32.totalorder %s64, %s65
      %p76 = scmp.eq.s32.totalorder %s14, 0
      %p77 = por %p75, %p76
      %p78 = scmp.ne.s32.totalorder %s64, %s65
      %p79 = scmp.eq.s32.totalorder %s15, 1
      %p80 = por %p78, %p79
      %p82 = scmp.ne.s32.totalorder %s65, %s81
      %p83 = scmp.eq.s32.totalorder %s15, 0
      %p84 = por %p82, %p83
      %s85 = ssub.s32 %s9, %s16
      %p86 = scmp.eq.s32.totalorder %s85, 0
      %s88 = sadd.s32 %s87, 1
      %s89 = scalar_select %p86, %s87, %s88
      %p92 = pneg %p86
      %p93 = scmp.eq.s32.totalorder %s9, 1
      %p94 = por %p92, %p93
      %p95 = scmp.ne.s32.totalorder %s87, %s90
      %p96 = scmp.eq.s32.totalorder %s9, 0
      %p97 = por %p95, %p96
      %p98 = scmp.ne.s32.totalorder %s87, %s90
      %p99 = scmp.eq.s32.totalorder %s14, 1
      %p100 = por %p98, %p99
      %p101 = scmp.ne.s32.totalorder %s90, %s91
      %p102 = scmp.eq.s32.totalorder %s14, 0
      %p103 = por %p101, %p102
      %p104 = scmp.ne.s32.totalorder %s90, %s91
      %p105 = scmp.eq.s32.totalorder %s15, 1
      %p106 = por %p104, %p105
      %p108 = scmp.ne.s32.totalorder %s91, %s107
      %p109 = scmp.eq.s32.totalorder %s15, 0
      %p110 = por %p108, %p109
      %p111 = scmp.le.s32.totalorder 1, %s9
      %p112 = scmp.lt.s32.totalorder %s9, 3
      %p113 = pnand %p111, %p112
      %p114 = pneg %p113
      // Predicated region
      $region9: #{convnet_forward.3} parent=5 // pred_check
        _
      $region10: #{convnet_forward.3} parent=5 // pred_check_branch
        %116 = sbr.rel (%p113) target = $region12
      $region11: #{convnet_forward.3} parent=5 // pred_region
        %s117 = ssub.s32 %s9, 1
        // Predicated region
        $region13: #{convnet_forward.3} parent=11 // pred_check
          %p118 = pneg %p30
        $region14: #{convnet_forward.3} parent=11 // pred_check_branch
          %120 = sbr.rel (%p118) target = $region16
        $region15: #{convnet_forward.3} parent=11 // pred_region
          _
        $region16: #{convnet_forward.3} parent=11 // pred_fallthru
          _
        // Predicated region
        $region17: #{convnet_forward.3} parent=11 // pred_check
          %p121 = pneg %p51
        $region18: #{convnet_forward.3} parent=11 // pred_check_branch
          %123 = sbr.rel (%p121) target = $region20
        $region19: #{convnet_forward.3} parent=11 // pred_region
          _
        $region20: #{convnet_forward.3} parent=11 // pred_fallthru
          _
      $region12: #{convnet_forward.3} parent=5 // pred_fallthru
        _
      %p124 = scmp.lt.s32.totalorder %s9, 2
      // Predicated region
      $region21: #{convnet_forward.3} parent=5 // pred_check
        %p125 = pneg %p124
      $region22: #{convnet_forward.3} parent=5 // pred_check_branch
        %127 = sbr.rel (%p125) target = $region24
      $region23: #{convnet_forward.3} parent=5 // pred_region
        // Predicated region
        $region25: #{convnet_forward.3} parent=23 // pred_check
          %p128 = pneg %p71
        $region26: #{convnet_forward.3} parent=23 // pred_check_branch
          %130 = sbr.rel (%p128) target = $region28
        $region27: #{convnet_forward.3} parent=23 // pred_region
          %s131 = sand.u32 %s61, 1
          %s132 = sand.u32 %s61, 1
          %s133 = smul.addr %s132, 512
          %s134 = scalar_lea.vmem [#allocation2], %s133
          %s135 = smul.u32 2, %s9
          %s136 = smul.addr %s135, 4
          %s137 = scalar_lea.vmem %s2, %s136
          // Predicated region
          $region29: #{convnet_forward.3} parent=27 // pred_check
            _
          $region30: #{convnet_forward.3} parent=27 // pred_check_branch
            %139 = sbr.rel (0) target = $region32
          $region31: #{convnet_forward.3} parent=27 // pred_region
            // Predicated region
            $region33: #{convnet_forward.3} parent=31 // pred_check
              _
            $region34: #{convnet_forward.3} parent=31 // pred_check_branch
              %141 = sbr.rel (0) target = $region36
            $region35: #{convnet_forward.3} parent=31 // pred_region
              // Predicated region
              $region48: #{convnet_forward.3} parent=35 // pred_check
                _
              $region49: #{convnet_forward.3} parent=35 // pred_check_branch
                %282 = sbr.rel (0) target = $region51
              $region50: #{convnet_forward.3} parent=35 // pred_region
                loop: start=0, step=1, limit=1
                $region52: #{convnet_forward.3} parent=50 // loop_pre_header
                  _
                $region53: #{convnet_forward.3} parent=50 // loop_header
                  %s284 = sphi 0, %s288
                  %p285 = scmp.ge.s32.totalorder %s284, 1
                  %s289 = sphi %s137, %s137
                  %s290 = sphi %s134, %s134
                $region54: #{convnet_forward.3} parent=50 // loop_header_branch
                  %287 = sbr.rel (%p285) target = $region58
                $region55: #{convnet_forward.3} parent=50 // loop_body
                  %v291 = vld [vmem:[%s289] sm:$0xff]
                  %292 = vst [vmem:[%s290] sm:$0xff] %v291
                  %v293 = vld [vmem:[%s289 + $0x10] sm:$0xff]
                  %294 = vst [vmem:[%s290 + $0x8] sm:$0xff] %v293
                  %v295 = vld [vmem:[%s289 + $0x20] sm:$0xff]
                  %296 = vst [vmem:[%s290 + $0x10] sm:$0xff] %v295
                  %v297 = vld [vmem:[%s289 + $0x30] sm:$0xff]
                  %298 = vst [vmem:[%s290 + $0x18] sm:$0xff] %v297
                  %v299 = vld [vmem:[%s289 + $0x40] sm:$0xff]
                  %300 = vst [vmem:[%s290 + $0x20] sm:$0xff] %v299
                  %v301 = vld [vmem:[%s289 + $0x50] sm:$0xff]
                  %302 = vst [vmem:[%s290 + $0x28] sm:$0xff] %v301
                  %v303 = vld [vmem:[%s289 + $0x60] sm:$0xff]
                  %304 = vst [vmem:[%s290 + $0x30] sm:$0xff] %v303
                  %v305 = vld [vmem:[%s289 + $0x70] sm:$0xff]
                  %306 = vst [vmem:[%s290 + $0x38] sm:$0xff] %v305
                  %v307 = vld [vmem:[%s289 + $0x80] sm:$0xff]
                  %308 = vst [vmem:[%s290 + $0x40] sm:$0xff] %v307
                  %v309 = vld [vmem:[%s289 + $0x90] sm:$0xff]
                  %310 = vst [vmem:[%s290 + $0x48] sm:$0xff] %v309
                  %v311 = vld [vmem:[%s289 + $0xa0] sm:$0xff]
                  %312 = vst [vmem:[%s290 + $0x50] sm:$0xff] %v311
                  %v313 = vld [vmem:[%s289 + $0xb0] sm:$0xff]
                  %314 = vst [vmem:[%s290 + $0x58] sm:$0xff] %v313
                  %v315 = vld [vmem:[%s289 + $0xc0] sm:$0xff]
                  %316 = vst [vmem:[%s290 + $0x60] sm:$0xff] %v315
                  %v317 = vld [vmem:[%s289 + $0xd0] sm:$0xff]
                  %318 = vst [vmem:[%s290 + $0x68] sm:$0xff] %v317
                  %v319 = vld [vmem:[%s289 + $0xe0] sm:$0xff]
                  %320 = vst [vmem:[%s290 + $0x70] sm:$0xff] %v319
                  %v321 = vld [vmem:[%s289 + $0xf0] sm:$0xff]
                  %322 = vst [vmem:[%s290 + $0x78] sm:$0xff] %v321
                  %v323 = vld [vmem:[%s289 + $0x100] sm:$0xff]
                  %324 = vst [vmem:[%s290 + $0x80] sm:$0xff] %v323
                  %v325 = vld [vmem:[%s289 + $0x110] sm:$0xff]
                  %326 = vst [vmem:[%s290 + $0x88] sm:$0xff] %v325
                  %v327 = vld [vmem:[%s289 + $0x120] sm:$0xff]
                  %328 = vst [vmem:[%s290 + $0x90] sm:$0xff] %v327
                  %v329 = vld [vmem:[%s289 + $0x130] sm:$0xff]
                  %330 = vst [vmem:[%s290 + $0x98] sm:$0xff] %v329
                  %v331 = vld [vmem:[%s289 + $0x140] sm:$0xff]
                  %332 = vst [vmem:[%s290 + $0xa0] sm:$0xff] %v331
                  %v333 = vld [vmem:[%s289 + $0x150] sm:$0xff]
                  %334 = vst [vmem:[%s290 + $0xa8] sm:$0xff] %v333
                  %v335 = vld [vmem:[%s289 + $0x160] sm:$0xff]
                  %336 = vst [vmem:[%s290 + $0xb0] sm:$0xff] %v335
                  %v337 = vld [vmem:[%s289 + $0x170] sm:$0xff]
                  %338 = vst [vmem:[%s290 + $0xb8] sm:$0xff] %v337
                  %v339 = vld [vmem:[%s289 + $0x180] sm:$0xff]
                  %340 = vst [vmem:[%s290 + $0xc0] sm:$0xff] %v339
                  %v341 = vld [vmem:[%s289 + $0x190] sm:$0xff]
                  %342 = vst [vmem:[%s290 + $0xc8] sm:$0xff] %v341
                  %v343 = vld [vmem:[%s289 + $0x1a0] sm:$0xff]
                  %344 = vst [vmem:[%s290 + $0xd0] sm:$0xff] %v343
                  %v345 = vld [vmem:[%s289 + $0x1b0] sm:$0xff]
                  %346 = vst [vmem:[%s290 + $0xd8] sm:$0xff] %v345
                  %v347 = vld [vmem:[%s289 + $0x1c0] sm:$0xff]
                  %348 = vst [vmem:[%s290 + $0xe0] sm:$0xff] %v347
                  %v349 = vld [vmem:[%s289 + $0x1d0] sm:$0xff]
                  %350 = vst [vmem:[%s290 + $0xe8] sm:$0xff] %v349
                  %v351 = vld [vmem:[%s289 + $0x1e0] sm:$0xff]
                  %352 = vst [vmem:[%s290 + $0xf0] sm:$0xff] %v351
                  %v353 = vld [vmem:[%s289 + $0x1f0] sm:$0xff]
                  %354 = vst [vmem:[%s290 + $0xf8] sm:$0xff] %v353
                  %v355 = vld [vmem:[%s289 + $0x200] sm:$0xff]
                  %356 = vst [vmem:[%s290 + $0x100] sm:$0xff] %v355
                  %v357 = vld [vmem:[%s289 + $0x210] sm:$0xff]
                  %358 = vst [vmem:[%s290 + $0x108] sm:$0xff] %v357
                  %v359 = vld [vmem:[%s289 + $0x220] sm:$0xff]
                  %360 = vst [vmem:[%s290 + $0x110] sm:$0xff] %v359
                  %v361 = vld [vmem:[%s289 + $0x230] sm:$0xff]
                  %362 = vst [vmem:[%s290 + $0x118] sm:$0xff] %v361
                  %v363 = vld [vmem:[%s289 + $0x240] sm:$0xff]
                  %364 = vst [vmem:[%s290 + $0x120] sm:$0xff] %v363
                  %v365 = vld [vmem:[%s289 + $0x250] sm:$0xff]
                  %366 = vst [vmem:[%s290 + $0x128] sm:$0xff] %v365
                  %v367 = vld [vmem:[%s289 + $0x260] sm:$0xff]
                  %368 = vst [vmem:[%s290 + $0x130] sm:$0xff] %v367
                  %v369 = vld [vmem:[%s289 + $0x270] sm:$0xff]
                  %370 = vst [vmem:[%s290 + $0x138] sm:$0xff] %v369
                  %v371 = vld [vmem:[%s289 + $0x280] sm:$0xff]
                  %372 = vst [vmem:[%s290 + $0x140] sm:$0xff] %v371
                  %v373 = vld [vmem:[%s289 + $0x290] sm:$0xff]
                  %374 = vst [vmem:[%s290 + $0x148] sm:$0xff] %v373
                  %v375 = vld [vmem:[%s289 + $0x2a0] sm:$0xff]
                  %376 = vst [vmem:[%s290 + $0x150] sm:$0xff] %v375
                  %v377 = vld [vmem:[%s289 + $0x2b0] sm:$0xff]
                  %378 = vst [vmem:[%s290 + $0x158] sm:$0xff] %v377
                  %v379 = vld [vmem:[%s289 + $0x2c0] sm:$0xff]
                  %380 = vst [vmem:[%s290 + $0x160] sm:$0xff] %v379
                  %v381 = vld [vmem:[%s289 + $0x2d0] sm:$0xff]
                  %382 = vst [vmem:[%s290 + $0x168] sm:$0xff] %v381
                  %v383 = vld [vmem:[%s289 + $0x2e0] sm:$0xff]
                  %384 = vst [vmem:[%s290 + $0x170] sm:$0xff] %v383
                  %v385 = vld [vmem:[%s289 + $0x2f0] sm:$0xff]
                  %386 = vst [vmem:[%s290 + $0x178] sm:$0xff] %v385
                  %v387 = vld [vmem:[%s289 + $0x300] sm:$0xff]
                  %388 = vst [vmem:[%s290 + $0x180] sm:$0xff] %v387
                  %v389 = vld [vmem:[%s289 + $0x310] sm:$0xff]
                  %390 = vst [vmem:[%s290 + $0x188] sm:$0xff] %v389
                  %v391 = vld [vmem:[%s289 + $0x320] sm:$0xff]
                  %392 = vst [vmem:[%s290 + $0x190] sm:$0xff] %v391
                  %v393 = vld [vmem:[%s289 + $0x330] sm:$0xff]
                  %394 = vst [vmem:[%s290 + $0x198] sm:$0xff] %v393
                  %v395 = vld [vmem:[%s289 + $0x340] sm:$0xff]
                  %396 = vst [vmem:[%s290 + $0x1a0] sm:$0xff] %v395
                  %v397 = vld [vmem:[%s289 + $0x350] sm:$0xff]
                  %398 = vst [vmem:[%s290 + $0x1a8] sm:$0xff] %v397
                  %v399 = vld [vmem:[%s289 + $0x360] sm:$0xff]
                  %400 = vst [vmem:[%s290 + $0x1b0] sm:$0xff] %v399
                  %v401 = vld [vmem:[%s289 + $0x370] sm:$0xff]
                  %402 = vst [vmem:[%s290 + $0x1b8] sm:$0xff] %v401
                  %v403 = vld [vmem:[%s289 + $0x380] sm:$0xff]
                  %404 = vst [vmem:[%s290 + $0x1c0] sm:$0xff] %v403
                  %v405 = vld [vmem:[%s289 + $0x390] sm:$0xff]
                  %406 = vst [vmem:[%s290 + $0x1c8] sm:$0xff] %v405
                  %v407 = vld [vmem:[%s289 + $0x3a0] sm:$0xff]
                  %408 = vst [vmem:[%s290 + $0x1d0] sm:$0xff] %v407
                  %v409 = vld [vmem:[%s289 + $0x3b0] sm:$0xff]
                  %410 = vst [vmem:[%s290 + $0x1d8] sm:$0xff] %v409
                  %v411 = vld [vmem:[%s289 + $0x3c0] sm:$0xff]
                  %412 = vst [vmem:[%s290 + $0x1e0] sm:$0xff] %v411
                  %v413 = vld [vmem:[%s289 + $0x3d0] sm:$0xff]
                  %414 = vst [vmem:[%s290 + $0x1e8] sm:$0xff] %v413
                  %v415 = vld [vmem:[%s289 + $0x3e0] sm:$0xff]
                  %416 = vst [vmem:[%s290 + $0x1f0] sm:$0xff] %v415
                  %v417 = vld [vmem:[%s289 + $0x3f0] sm:$0xff]
                  %418 = vst [vmem:[%s290 + $0x1f8] sm:$0xff] %v417
                $region56: #{convnet_forward.3} parent=50 // loop_footer
                  %s288 = sadd.s32 1, %s284
                $region57: #{convnet_forward.3} parent=50 // loop_footer_branch
                  %283 = sbr.rel target = $region53
                $region58: #{convnet_forward.3} parent=50 // loop_exit
                  _
              $region51: #{convnet_forward.3} parent=35 // pred_fallthru
                _
              // Predicated region
              $region59: #{convnet_forward.3} parent=35 // pred_check
                _
              $region60: #{convnet_forward.3} parent=35 // pred_check_branch
                %420 = sbr.rel target = $region62
              $region61: #{convnet_forward.3} parent=35 // pred_region
                _
              $region62: #{convnet_forward.3} parent=35 // pred_fallthru
                _
            $region36: #{convnet_forward.3} parent=31 // pred_fallthru
              _
            // Predicated region
            $region37: #{convnet_forward.3} parent=31 // pred_check
              _
            $region38: #{convnet_forward.3} parent=31 // pred_check_branch
              %143 = sbr.rel target = $region40
            $region39: #{convnet_forward.3} parent=31 // pred_region
              loop: start=0, step=1, limit=1
              $region41: #{convnet_forward.3} parent=39 // loop_pre_header
                _
              $region42: #{convnet_forward.3} parent=39 // loop_header
                %s146 = sphi 0, %s150
                %p147 = scmp.ge.s32.totalorder %s146, 1
                %s151 = sphi %s137, %s137
                %s152 = sphi %s134, %s134
              $region43: #{convnet_forward.3} parent=39 // loop_header_branch
                %149 = sbr.rel (%p147) target = $region47
              $region44: #{convnet_forward.3} parent=39 // loop_body
                %v153 = vld [vmem:[%s151] sm:$0xff]
                %154 = vst [vmem:[%s152] sm:$0xff] %v153
                %v155 = vld [vmem:[%s151 + $0x10] sm:$0xff]
                %156 = vst [vmem:[%s152 + $0x8] sm:$0xff] %v155
                %v157 = vld [vmem:[%s151 + $0x20] sm:$0xff]
                %158 = vst [vmem:[%s152 + $0x10] sm:$0xff] %v157
                %v159 = vld [vmem:[%s151 + $0x30] sm:$0xff]
                %160 = vst [vmem:[%s152 + $0x18] sm:$0xff] %v159
                %v161 = vld [vmem:[%s151 + $0x40] sm:$0xff]
                %162 = vst [vmem:[%s152 + $0x20] sm:$0xff] %v161
                %v163 = vld [vmem:[%s151 + $0x50] sm:$0xff]
                %164 = vst [vmem:[%s152 + $0x28] sm:$0xff] %v163
                %v165 = vld [vmem:[%s151 + $0x60] sm:$0xff]
                %166 = vst [vmem:[%s152 + $0x30] sm:$0xff] %v165
                %v167 = vld [vmem:[%s151 + $0x70] sm:$0xff]
                %168 = vst [vmem:[%s152 + $0x38] sm:$0xff] %v167
                %v169 = vld [vmem:[%s151 + $0x80] sm:$0xff]
                %170 = vst [vmem:[%s152 + $0x40] sm:$0xff] %v169
                %v171 = vld [vmem:[%s151 + $0x90] sm:$0xff]
                %172 = vst [vmem:[%s152 + $0x48] sm:$0xff] %v171
                %v173 = vld [vmem:[%s151 + $0xa0] sm:$0xff]
                %174 = vst [vmem:[%s152 + $0x50] sm:$0xff] %v173
                %v175 = vld [vmem:[%s151 + $0xb0] sm:$0xff]
                %176 = vst [vmem:[%s152 + $0x58] sm:$0xff] %v175
                %v177 = vld [vmem:[%s151 + $0xc0] sm:$0xff]
                %178 = vst [vmem:[%s152 + $0x60] sm:$0xff] %v177
                %v179 = vld [vmem:[%s151 + $0xd0] sm:$0xff]
                %180 = vst [vmem:[%s152 + $0x68] sm:$0xff] %v179
                %v181 = vld [vmem:[%s151 + $0xe0] sm:$0xff]
                %182 = vst [vmem:[%s152 + $0x70] sm:$0xff] %v181
                %v183 = vld [vmem:[%s151 + $0xf0] sm:$0xff]
                %184 = vst [vmem:[%s152 + $0x78] sm:$0xff] %v183
                %v185 = vld [vmem:[%s151 + $0x100] sm:$0xff]
                %186 = vst [vmem:[%s152 + $0x80] sm:$0xff] %v185
                %v187 = vld [vmem:[%s151 + $0x110] sm:$0xff]
                %188 = vst [vmem:[%s152 + $0x88] sm:$0xff] %v187
                %v189 = vld [vmem:[%s151 + $0x120] sm:$0xff]
                %190 = vst [vmem:[%s152 + $0x90] sm:$0xff] %v189
                %v191 = vld [vmem:[%s151 + $0x130] sm:$0xff]
                %192 = vst [vmem:[%s152 + $0x98] sm:$0xff] %v191
                %v193 = vld [vmem:[%s151 + $0x140] sm:$0xff]
                %194 = vst [vmem:[%s152 + $0xa0] sm:$0xff] %v193
                %v195 = vld [vmem:[%s151 + $0x150] sm:$0xff]
                %196 = vst [vmem:[%s152 + $0xa8] sm:$0xff] %v195
                %v197 = vld [vmem:[%s151 + $0x160] sm:$0xff]
                %198 = vst [vmem:[%s152 + $0xb0] sm:$0xff] %v197
                %v199 = vld [vmem:[%s151 + $0x170] sm:$0xff]
                %200 = vst [vmem:[%s152 + $0xb8] sm:$0xff] %v199
                %v201 = vld [vmem:[%s151 + $0x180] sm:$0xff]
                %202 = vst [vmem:[%s152 + $0xc0] sm:$0xff] %v201
                %v203 = vld [vmem:[%s151 + $0x190] sm:$0xff]
                %204 = vst [vmem:[%s152 + $0xc8] sm:$0xff] %v203
                %v205 = vld [vmem:[%s151 + $0x1a0] sm:$0xff]
                %206 = vst [vmem:[%s152 + $0xd0] sm:$0xff] %v205
                %v207 = vld [vmem:[%s151 + $0x1b0] sm:$0xff]
                %208 = vst [vmem:[%s152 + $0xd8] sm:$0xff] %v207
                %v209 = vld [vmem:[%s151 + $0x1c0] sm:$0xff]
                %210 = vst [vmem:[%s152 + $0xe0] sm:$0xff] %v209
                %v211 = vld [vmem:[%s151 + $0x1d0] sm:$0xff]
                %212 = vst [vmem:[%s152 + $0xe8] sm:$0xff] %v211
                %v213 = vld [vmem:[%s151 + $0x1e0] sm:$0xff]
                %214 = vst [vmem:[%s152 + $0xf0] sm:$0xff] %v213
                %v215 = vld [vmem:[%s151 + $0x1f0] sm:$0xff]
                %216 = vst [vmem:[%s152 + $0xf8] sm:$0xff] %v215
                %v217 = vld [vmem:[%s151 + $0x200] sm:$0xff]
                %218 = vst [vmem:[%s152 + $0x100] sm:$0xff] %v217
                %v219 = vld [vmem:[%s151 + $0x210] sm:$0xff]
                %220 = vst [vmem:[%s152 + $0x108] sm:$0xff] %v219
                %v221 = vld [vmem:[%s151 + $0x220] sm:$0xff]
                %222 = vst [vmem:[%s152 + $0x110] sm:$0xff] %v221
                %v223 = vld [vmem:[%s151 + $0x230] sm:$0xff]
                %224 = vst [vmem:[%s152 + $0x118] sm:$0xff] %v223
                %v225 = vld [vmem:[%s151 + $0x240] sm:$0xff]
                %226 = vst [vmem:[%s152 + $0x120] sm:$0xff] %v225
                %v227 = vld [vmem:[%s151 + $0x250] sm:$0xff]
                %228 = vst [vmem:[%s152 + $0x128] sm:$0xff] %v227
                %v229 = vld [vmem:[%s151 + $0x260] sm:$0xff]
                %230 = vst [vmem:[%s152 + $0x130] sm:$0xff] %v229
                %v231 = vld [vmem:[%s151 + $0x270] sm:$0xff]
                %232 = vst [vmem:[%s152 + $0x138] sm:$0xff] %v231
                %v233 = vld [vmem:[%s151 + $0x280] sm:$0xff]
                %234 = vst [vmem:[%s152 + $0x140] sm:$0xff] %v233
                %v235 = vld [vmem:[%s151 + $0x290] sm:$0xff]
                %236 = vst [vmem:[%s152 + $0x148] sm:$0xff] %v235
                %v237 = vld [vmem:[%s151 + $0x2a0] sm:$0xff]
                %238 = vst [vmem:[%s152 + $0x150] sm:$0xff] %v237
                %v239 = vld [vmem:[%s151 + $0x2b0] sm:$0xff]
                %240 = vst [vmem:[%s152 + $0x158] sm:$0xff] %v239
                %v241 = vld [vmem:[%s151 + $0x2c0] sm:$0xff]
                %242 = vst [vmem:[%s152 + $0x160] sm:$0xff] %v241
                %v243 = vld [vmem:[%s151 + $0x2d0] sm:$0xff]
                %244 = vst [vmem:[%s152 + $0x168] sm:$0xff] %v243
                %v245 = vld [vmem:[%s151 + $0x2e0] sm:$0xff]
                %246 = vst [vmem:[%s152 + $0x170] sm:$0xff] %v245
                %v247 = vld [vmem:[%s151 + $0x2f0] sm:$0xff]
                %248 = vst [vmem:[%s152 + $0x178] sm:$0xff] %v247
                %v249 = vld [vmem:[%s151 + $0x300] sm:$0xff]
                %250 = vst [vmem:[%s152 + $0x180] sm:$0xff] %v249
                %v251 = vld [vmem:[%s151 + $0x310] sm:$0xff]
                %252 = vst [vmem:[%s152 + $0x188] sm:$0xff] %v251
                %v253 = vld [vmem:[%s151 + $0x320] sm:$0xff]
                %254 = vst [vmem:[%s152 + $0x190] sm:$0xff] %v253
                %v255 = vld [vmem:[%s151 + $0x330] sm:$0xff]
                %256 = vst [vmem:[%s152 + $0x198] sm:$0xff] %v255
                %v257 = vld [vmem:[%s151 + $0x340] sm:$0xff]
                %258 = vst [vmem:[%s152 + $0x1a0] sm:$0xff] %v257
                %v259 = vld [vmem:[%s151 + $0x350] sm:$0xff]
                %260 = vst [vmem:[%s152 + $0x1a8] sm:$0xff] %v259
                %v261 = vld [vmem:[%s151 + $0x360] sm:$0xff]
                %262 = vst [vmem:[%s152 + $0x1b0] sm:$0xff] %v261
                %v263 = vld [vmem:[%s151 + $0x370] sm:$0xff]
                %264 = vst [vmem:[%s152 + $0x1b8] sm:$0xff] %v263
                %v265 = vld [vmem:[%s151 + $0x380] sm:$0xff]
                %266 = vst [vmem:[%s152 + $0x1c0] sm:$0xff] %v265
                %v267 = vld [vmem:[%s151 + $0x390] sm:$0xff]
                %268 = vst [vmem:[%s152 + $0x1c8] sm:$0xff] %v267
                %v269 = vld [vmem:[%s151 + $0x3a0] sm:$0xff]
                %270 = vst [vmem:[%s152 + $0x1d0] sm:$0xff] %v269
                %v271 = vld [vmem:[%s151 + $0x3b0] sm:$0xff]
                %272 = vst [vmem:[%s152 + $0x1d8] sm:$0xff] %v271
                %v273 = vld [vmem:[%s151 + $0x3c0] sm:$0xff]
                %274 = vst [vmem:[%s152 + $0x1e0] sm:$0xff] %v273
                %v275 = vld [vmem:[%s151 + $0x3d0] sm:$0xff]
                %276 = vst [vmem:[%s152 + $0x1e8] sm:$0xff] %v275
                %v277 = vld [vmem:[%s151 + $0x3e0] sm:$0xff]
                %278 = vst [vmem:[%s152 + $0x1f0] sm:$0xff] %v277
                %v279 = vld [vmem:[%s151 + $0x3f0] sm:$0xff]
                %280 = vst [vmem:[%s152 + $0x1f8] sm:$0xff] %v279
              $region45: #{convnet_forward.3} parent=39 // loop_footer
                %s150 = sadd.s32 1, %s146
              $region46: #{convnet_forward.3} parent=39 // loop_footer_branch
                %145 = sbr.rel target = $region42
              $region47: #{convnet_forward.3} parent=39 // loop_exit
                _
            $region40: #{convnet_forward.3} parent=31 // pred_fallthru
              _
          $region32: #{convnet_forward.3} parent=27 // pred_fallthru
            _
          %421 = vnop
        $region28: #{convnet_forward.3} parent=23 // pred_fallthru
          _
      $region24: #{convnet_forward.3} parent=5 // pred_fallthru
        _
      %p422 = scmp.le.s32.totalorder 1, %s9
      %p423 = scmp.lt.s32.totalorder %s9, 3
      %p424 = pnand %p422, %p423
      %p425 = pneg %p424
      // Predicated region
      $region63: #{convnet_forward.3} parent=5 // pred_check
        _
      $region64: #{convnet_forward.3} parent=5 // pred_check_branch
        %427 = sbr.rel (%p424) target = $region66
      $region65: #{convnet_forward.3} parent=5 // pred_region
        %s428 = ssub.s32 %s9, 1
        %s429 = sand.u32 %s64, 1
        %s430 = sand.u32 %s64, 1
        %s431 = smul.addr %s430, 512
        %s432 = scalar_lea.vmem [#allocation2], %s431
        // Predicated region
        $region67: #{convnet_forward.3} parent=65 // pred_check
          %p433 = pneg %p77
        $region68: #{convnet_forward.3} parent=65 // pred_check_branch
          %435 = sbr.rel (%p433) target = $region70
        $region69: #{convnet_forward.3} parent=65 // pred_region
          _
        $region70: #{convnet_forward.3} parent=65 // pred_fallthru
          _
        %p436 = pneg %p30
        %p437 = pneg %p27
        %p438 = pneg %p51
        %p439 = pneg %p48
        %s440 = sand.u32 %s64, 1
        %s441 = sand.u32 %s64, 1
        %s442 = smul.addr %s441, 512
        %s443 = scalar_lea.vmem [#allocation2], %s442
        %p444 = pneg %p77
        %p445 = pneg %p74
        %p446 = pneg %p103
        %p447 = pneg %p100
        %s448 = sand.u32 %s90, 1
        %s449 = sand.u32 %s90, 1
        %s450 = smul.addr %s449, 32
        %s451 = scalar_lea.vmem [#allocation3], %s450
        %s452 = smul.u32 2, %s14
        %s453 = smul.u32 2, %s14
        %v455 = vld [vmem:[%s0] sm:$0xf]
        %v456 = vld [vmem:[%s0 + $0x4] sm:$0xf]
        %v457 = vld [vmem:[%s432] sm:$0xff]
        %v458 = vld [vmem:[%s432 + $0x8] sm:$0xff]
        %v459 = vld [vmem:[%s432 + $0x10] sm:$0xff]
        %v460 = vld [vmem:[%s432 + $0x18] sm:$0xff]
        %v461 = vld [vmem:[%s432 + $0x20] sm:$0xff]
        %v462 = vld [vmem:[%s432 + $0x28] sm:$0xff]
        %v463 = vld [vmem:[%s432 + $0x30] sm:$0xff]
        %v464 = vld [vmem:[%s432 + $0x38] sm:$0xff]
        %v465 = vld [vmem:[%s432 + $0x40] sm:$0xff]
        %v466 = vld [vmem:[%s432 + $0x48] sm:$0xff]
        %v467 = vld [vmem:[%s432 + $0x50] sm:$0xff]
        %v468 = vld [vmem:[%s432 + $0x58] sm:$0xff]
        %v469 = vld [vmem:[%s432 + $0x60] sm:$0xff]
        %v470 = vld [vmem:[%s432 + $0x68] sm:$0xff]
        %v471 = vld [vmem:[%s432 + $0x70] sm:$0xff]
        %v472 = vld [vmem:[%s432 + $0x78] sm:$0xff]
        %v475 = vunpack.c.l.b16 %v455
        %v476 = vunpack.c.l.b16 %v456
        %v477 = vpack.c.b16 %v476, %v475
        %v495 = vunpack.c.l.b16 %v457
        %v496 = vunpack.c.h.b16 %v457
        %v497 = vunpack.c.l.b16 %v458
        %v498 = vunpack.c.h.b16 %v458
        %v499 = vunpack.c.l.b16 %v459
        %v500 = vunpack.c.h.b16 %v459
        %v501 = vunpack.c.l.b16 %v460
        %v502 = vunpack.c.h.b16 %v460
        %v503 = vunpack.c.l.b16 %v461
        %v504 = vunpack.c.h.b16 %v461
        %v505 = vunpack.c.l.b16 %v462
        %v506 = vunpack.c.h.b16 %v462
        %v507 = vunpack.c.l.b16 %v463
        %v508 = vunpack.c.h.b16 %v463
        %v509 = vunpack.c.l.b16 %v464
        %v510 = vunpack.c.h.b16 %v464
        %v511 = vunpack.c.l.b16 %v465
        %v512 = vunpack.c.h.b16 %v465
        %v513 = vunpack.c.l.b16 %v466
        %v514 = vunpack.c.h.b16 %v466
        %v515 = vunpack.c.l.b16 %v467
        %v516 = vunpack.c.h.b16 %v467
        %v517 = vunpack.c.l.b16 %v468
        %v518 = vunpack.c.h.b16 %v468
        %v519 = vunpack.c.l.b16 %v469
        %v520 = vunpack.c.h.b16 %v469
        %v521 = vunpack.c.l.b16 %v470
        %v522 = vunpack.c.h.b16 %v470
        %v523 = vunpack.c.l.b16 %v471
        %v524 = vunpack.c.h.b16 %v471
        %v525 = vunpack.c.l.b16 %v472
        %v526 = vunpack.c.h.b16 %v472
        %v527 = vpack.c.b16 %v497, %v495
        %v528 = vpack.c.b16 %v498, %v496
        %v529 = vpack.c.b16 %v501, %v499
        %v530 = vpack.c.b16 %v502, %v500
        %v531 = vpack.c.b16 %v505, %v503
        %v532 = vpack.c.b16 %v506, %v504
        %v533 = vpack.c.b16 %v509, %v507
        %v534 = vpack.c.b16 %v510, %v508
        %v535 = vpack.c.b16 %v513, %v511
        %v536 = vpack.c.b16 %v514, %v512
        %v537 = vpack.c.b16 %v517, %v515
        %v538 = vpack.c.b16 %v518, %v516
        %v539 = vpack.c.b16 %v521, %v519
        %v540 = vpack.c.b16 %v522, %v520
        %v541 = vpack.c.b16 %v525, %v523
        %v542 = vpack.c.b16 %v526, %v524
        %559 = vmatprep.subr.bf16.mxu0 %v528
        %560 = vmatpush1.bf16.msra.mxu0 %v527
        %561 = vmatprep.subr.bf16.mxu0 %v530
        %562 = vmatpush1.bf16.msra.mxu0 %v529
        %563 = vmatprep.subr.bf16.mxu0 %v532
        %564 = vmatpush1.bf16.msra.mxu0 %v531
        %565 = vmatprep.subr.bf16.mxu0 %v534
        %566 = vmatpush1.bf16.msra.mxu0 %v533
        %567 = vmatprep.subr.bf16.mxu0 %v536
        %568 = vmatpush1.bf16.msra.mxu0 %v535
        %569 = vmatprep.subr.bf16.mxu0 %v538
        %570 = vmatpush1.bf16.msra.mxu0 %v537
        %571 = vmatprep.subr.bf16.mxu0 %v540
        %572 = vmatpush1.bf16.msra.mxu0 %v539
        %573 = vmatprep.subr.bf16.mxu0 %v542
        %574 = vmatpush1.bf16.msra.mxu0 %v541
        %575 = vmatprep.subr.bf16.mxu0 0
        %576 = vmatpush1.bf16.msra.mxu0 0
        %577 = vmatprep.subr.bf16.mxu0 0
        %578 = vmatpush1.bf16.msra.mxu0 0
        %579 = vmatprep.subr.bf16.mxu0 0
        %580 = vmatpush1.bf16.msra.mxu0 0
        %581 = vmatprep.subr.bf16.mxu0 0
        %582 = vmatpush1.bf16.msra.mxu0 0
        %583 = vmatprep.subr.bf16.mxu0 0
        %584 = vmatpush1.bf16.msra.mxu0 0
        %585 = vmatprep.subr.bf16.mxu0 0
        %586 = vmatpush1.bf16.msra.mxu0 0
        %587 = vmatprep.subr.bf16.mxu0 0
        %588 = vmatpush1.bf16.msra.mxu0 0
        %589 = vmatprep.subr.bf16.mxu0 0
        %590 = vmatpush1.bf16.msra.mxu0 0
        %591 = vmatprep.mubr.bf16.mxu0 0
        %592 = vmatmul.mubr.bf16.gmra.mrb[0].mxu0 %v477
        %v593 = vpop.f32.mrb[0].mxu0
        %v594 = vadd.f32 0.0, %v593
        %v595 = vpop.f32.mrb[0].mxu0
        %v596 = vadd.f32 0.0, %v595
        %v597 = vpop.f32.mrb[0].mxu0
        %v598 = vadd.f32 0.0, %v597
        %v599 = vpop.f32.mrb[0].mxu0
        %v600 = vadd.f32 0.0, %v599
        %601 = vdwg.mxu0
        %s602 = scalar_lea.vmem %s432, 128 [#allocation2]
        %v603 = vld [vmem:[%s602] sm:$0xff]
        %v604 = vld [vmem:[%s602 + $0x8] sm:$0xff]
        %v605 = vld [vmem:[%s602 + $0x10] sm:$0xff]
        %v606 = vld [vmem:[%s602 + $0x18] sm:$0xff]
        %v607 = vld [vmem:[%s602 + $0x20] sm:$0xff]
        %v608 = vld [vmem:[%s602 + $0x28] sm:$0xff]
        %v609 = vld [vmem:[%s602 + $0x30] sm:$0xff]
        %v610 = vld [vmem:[%s602 + $0x38] sm:$0xff]
        %v611 = vld [vmem:[%s602 + $0x40] sm:$0xff]
        %v612 = vld [vmem:[%s602 + $0x48] sm:$0xff]
        %v613 = vld [vmem:[%s602 + $0x50] sm:$0xff]
        %v614 = vld [vmem:[%s602 + $0x58] sm:$0xff]
        %v615 = vld [vmem:[%s602 + $0x60] sm:$0xff]
        %v616 = vld [vmem:[%s602 + $0x68] sm:$0xff]
        %v617 = vld [vmem:[%s602 + $0x70] sm:$0xff]
        %v618 = vld [vmem:[%s602 + $0x78] sm:$0xff]
        %v635 = vunpack.c.l.b16 %v603
        %v636 = vunpack.c.h.b16 %v603
        %v637 = vunpack.c.l.b16 %v604
        %v638 = vunpack.c.h.b16 %v604
        %v639 = vunpack.c.l.b16 %v605
        %v640 = vunpack.c.h.b16 %v605
        %v641 = vunpack.c.l.b16 %v606
        %v642 = vunpack.c.h.b16 %v606
        %v643 = vunpack.c.l.b16 %v607
        %v644 = vunpack.c.h.b16 %v607
        %v645 = vunpack.c.l.b16 %v608
        %v646 = vunpack.c.h.b16 %v608
        %v647 = vunpack.c.l.b16 %v609
        %v648 = vunpack.c.h.b16 %v609
        %v649 = vunpack.c.l.b16 %v610
        %v650 = vunpack.c.h.b16 %v610
        %v651 = vunpack.c.l.b16 %v611
        %v652 = vunpack.c.h.b16 %v611
        %v653 = vunpack.c.l.b16 %v612
        %v654 = vunpack.c.h.b16 %v612
        %v655 = vunpack.c.l.b16 %v613
        %v656 = vunpack.c.h.b16 %v613
        %v657 = vunpack.c.l.b16 %v614
        %v658 = vunpack.c.h.b16 %v614
        %v659 = vunpack.c.l.b16 %v615
        %v660 = vunpack.c.h.b16 %v615
        %v661 = vunpack.c.l.b16 %v616
        %v662 = vunpack.c.h.b16 %v616
        %v663 = vunpack.c.l.b16 %v617
        %v664 = vunpack.c.h.b16 %v617
        %v665 = vunpack.c.l.b16 %v618
        %v666 = vunpack.c.h.b16 %v618
        %v667 = vpack.c.b16 %v637, %v635
        %v668 = vpack.c.b16 %v638, %v636
        %v669 = vpack.c.b16 %v641, %v639
        %v670 = vpack.c.b16 %v642, %v640
        %v671 = vpack.c.b16 %v645, %v643
        %v672 = vpack.c.b16 %v646, %v644
        %v673 = vpack.c.b16 %v649, %v647
        %v674 = vpack.c.b16 %v650, %v648
        %v675 = vpack.c.b16 %v653, %v651
        %v676 = vpack.c.b16 %v654, %v652
        %v677 = vpack.c.b16 %v657, %v655
        %v678 = vpack.c.b16 %v658, %v656
        %v679 = vpack.c.b16 %v661, %v659
        %v680 = vpack.c.b16 %v662, %v660
        %v681 = vpack.c.b16 %v665, %v663
        %v682 = vpack.c.b16 %v666, %v664
        %699 = vmatprep.subr.bf16.mxu0 %v668
        %700 = vmatpush1.bf16.msra.mxu0 %v667
        %701 = vmatprep.subr.bf16.mxu0 %v670
        %702 = vmatpush1.bf16.msra.mxu0 %v669
        %703 = vmatprep.subr.bf16.mxu0 %v672
        %704 = vmatpush1.bf16.msra.mxu0 %v671
        %705 = vmatprep.subr.bf16.mxu0 %v674
        %706 = vmatpush1.bf16.msra.mxu0 %v673
        %707 = vmatprep.subr.bf16.mxu0 %v676
        %708 = vmatpush1.bf16.msra.mxu0 %v675
        %709 = vmatprep.subr.bf16.mxu0 %v678
        %710 = vmatpush1.bf16.msra.mxu0 %v677
        %711 = vmatprep.subr.bf16.mxu0 %v680
        %712 = vmatpush1.bf16.msra.mxu0 %v679
        %713 = vmatprep.subr.bf16.mxu0 %v682
        %714 = vmatpush1.bf16.msra.mxu0 %v681
        %715 = vmatprep.subr.bf16.mxu0 0
        %716 = vmatpush1.bf16.msra.mxu0 0
        %717 = vmatprep.subr.bf16.mxu0 0
        %718 = vmatpush1.bf16.msra.mxu0 0
        %719 = vmatprep.subr.bf16.mxu0 0
        %720 = vmatpush1.bf16.msra.mxu0 0
        %721 = vmatprep.subr.bf16.mxu0 0
        %722 = vmatpush1.bf16.msra.mxu0 0
        %723 = vmatprep.subr.bf16.mxu0 0
        %724 = vmatpush1.bf16.msra.mxu0 0
        %725 = vmatprep.subr.bf16.mxu0 0
        %726 = vmatpush1.bf16.msra.mxu0 0
        %727 = vmatprep.subr.bf16.mxu0 0
        %728 = vmatpush1.bf16.msra.mxu0 0
        %729 = vmatprep.subr.bf16.mxu0 0
        %730 = vmatpush1.bf16.msra.mxu0 0
        %731 = vmatprep.mubr.bf16.mxu0 0
        %732 = vmatmul.mubr.bf16.gmra.mrb[0].mxu0 %v477
        %v733 = vpop.f32.mrb[0].mxu0
        %v734 = vadd.f32 0.0, %v733
        %v735 = vpop.f32.mrb[0].mxu0
        %v736 = vadd.f32 0.0, %v735
        %v737 = vpop.f32.mrb[0].mxu0
        %v738 = vadd.f32 0.0, %v737
        %v739 = vpop.f32.mrb[0].mxu0
        %v740 = vadd.f32 0.0, %v739
        %741 = vdwg.mxu0
        %v742 = vmax.f32 %v594, %v734
        %v743 = vmax.f32 %v596, %v736
        %v744 = vmax.f32 %v598, %v738
        %v745 = vmax.f32 %v600, %v740
        %s746 = scalar_lea.vmem %s432, 256 [#allocation2]
        %v747 = vld [vmem:[%s746] sm:$0xff]
        %v748 = vld [vmem:[%s746 + $0x8] sm:$0xff]
        %v749 = vld [vmem:[%s746 + $0x10] sm:$0xff]
        %v750 = vld [vmem:[%s746 + $0x18] sm:$0xff]
        %v751 = vld [vmem:[%s746 + $0x20] sm:$0xff]
        %v752 = vld [vmem:[%s746 + $0x28] sm:$0xff]
        %v753 = vld [vmem:[%s746 + $0x30] sm:$0xff]
        %v754 = vld [vmem:[%s746 + $0x38] sm:$0xff]
        %v755 = vld [vmem:[%s746 + $0x40] sm:$0xff]
        %v756 = vld [vmem:[%s746 + $0x48] sm:$0xff]
        %v757 = vld [vmem:[%s746 + $0x50] sm:$0xff]
        %v758 = vld [vmem:[%s746 + $0x58] sm:$0xff]
        %v759 = vld [vmem:[%s746 + $0x60] sm:$0xff]
        %v760 = vld [vmem:[%s746 + $0x68] sm:$0xff]
        %v761 = vld [vmem:[%s746 + $0x70] sm:$0xff]
        %v762 = vld [vmem:[%s746 + $0x78] sm:$0xff]
        %v779 = vunpack.c.l.b16 %v747
        %v780 = vunpack.c.h.b16 %v747
        %v781 = vunpack.c.l.b16 %v748
        %v782 = vunpack.c.h.b16 %v748
        %v783 = vunpack.c.l.b16 %v749
        %v784 = vunpack.c.h.b16 %v749
        %v785 = vunpack.c.l.b16 %v750
        %v786 = vunpack.c.h.b16 %v750
        %v787 = vunpack.c.l.b16 %v751
        %v788 = vunpack.c.h.b16 %v751
        %v789 = vunpack.c.l.b16 %v752
        %v790 = vunpack.c.h.b16 %v752
        %v791 = vunpack.c.l.b16 %v753
        %v792 = vunpack.c.h.b16 %v753
        %v793 = vunpack.c.l.b16 %v754
        %v794 = vunpack.c.h.b16 %v754
        %v795 = vunpack.c.l.b16 %v755
        %v796 = vunpack.c.h.b16 %v755
        %v797 = vunpack.c.l.b16 %v756
        %v798 = vunpack.c.h.b16 %v756
        %v799 = vunpack.c.l.b16 %v757
        %v800 = vunpack.c.h.b16 %v757
        %v801 = vunpack.c.l.b16 %v758
        %v802 = vunpack.c.h.b16 %v758
        %v803 = vunpack.c.l.b16 %v759
        %v804 = vunpack.c.h.b16 %v759
        %v805 = vunpack.c.l.b16 %v760
        %v806 = vunpack.c.h.b16 %v760
        %v807 = vunpack.c.l.b16 %v761
        %v808 = vunpack.c.h.b16 %v761
        %v809 = vunpack.c.l.b16 %v762
        %v810 = vunpack.c.h.b16 %v762
        %v811 = vpack.c.b16 %v781, %v779
        %v812 = vpack.c.b16 %v782, %v780
        %v813 = vpack.c.b16 %v785, %v783
        %v814 = vpack.c.b16 %v786, %v784
        %v815 = vpack.c.b16 %v789, %v787
        %v816 = vpack.c.b16 %v790, %v788
        %v817 = vpack.c.b16 %v793, %v791
        %v818 = vpack.c.b16 %v794, %v792
        %v819 = vpack.c.b16 %v797, %v795
        %v820 = vpack.c.b16 %v798, %v796
        %v821 = vpack.c.b16 %v801, %v799
        %v822 = vpack.c.b16 %v802, %v800
        %v823 = vpack.c.b16 %v805, %v803
        %v824 = vpack.c.b16 %v806, %v804
        %v825 = vpack.c.b16 %v809, %v807
        %v826 = vpack.c.b16 %v810, %v808
        %843 = vmatprep.subr.bf16.mxu0 %v812
        %844 = vmatpush1.bf16.msra.mxu0 %v811
        %845 = vmatprep.subr.bf16.mxu0 %v814
        %846 = vmatpush1.bf16.msra.mxu0 %v813
        %847 = vmatprep.subr.bf16.mxu0 %v816
        %848 = vmatpush1.bf16.msra.mxu0 %v815
        %849 = vmatprep.subr.bf16.mxu0 %v818
        %850 = vmatpush1.bf16.msra.mxu0 %v817
        %851 = vmatprep.subr.bf16.mxu0 %v820
        %852 = vmatpush1.bf16.msra.mxu0 %v819
        %853 = vmatprep.subr.bf16.mxu0 %v822
        %854 = vmatpush1.bf16.msra.mxu0 %v821
        %855 = vmatprep.subr.bf16.mxu0 %v824
        %856 = vmatpush1.bf16.msra.mxu0 %v823
        %857 = vmatprep.subr.bf16.mxu0 %v826
        %858 = vmatpush1.bf16.msra.mxu0 %v825
        %859 = vmatprep.subr.bf16.mxu0 0
        %860 = vmatpush1.bf16.msra.mxu0 0
        %861 = vmatprep.subr.bf16.mxu0 0
        %862 = vmatpush1.bf16.msra.mxu0 0
        %863 = vmatprep.subr.bf16.mxu0 0
        %864 = vmatpush1.bf16.msra.mxu0 0
        %865 = vmatprep.subr.bf16.mxu0 0
        %866 = vmatpush1.bf16.msra.mxu0 0
        %867 = vmatprep.subr.bf16.mxu0 0
        %868 = vmatpush1.bf16.msra.mxu0 0
        %869 = vmatprep.subr.bf16.mxu0 0
        %870 = vmatpush1.bf16.msra.mxu0 0
        %871 = vmatprep.subr.bf16.mxu0 0
        %872 = vmatpush1.bf16.msra.mxu0 0
        %873 = vmatprep.subr.bf16.mxu0 0
        %874 = vmatpush1.bf16.msra.mxu0 0
        %875 = vmatprep.mubr.bf16.mxu0 0
        %876 = vmatmul.mubr.bf16.gmra.mrb[0].mxu0 %v477
        %v877 = vpop.f32.mrb[0].mxu0
        %v878 = vadd.f32 0.0, %v877
        %v879 = vpop.f32.mrb[0].mxu0
        %v880 = vadd.f32 0.0, %v879
        %v881 = vpop.f32.mrb[0].mxu0
        %v882 = vadd.f32 0.0, %v881
        %v883 = vpop.f32.mrb[0].mxu0
        %v884 = vadd.f32 0.0, %v883
        %885 = vdwg.mxu0
        %v886 = vmax.f32 %v742, %v878
        %v887 = vmax.f32 %v743, %v880
        %v888 = vmax.f32 %v744, %v882
        %v889 = vmax.f32 %v745, %v884
        %s890 = scalar_lea.vmem %s432, 384 [#allocation2]
        %v891 = vld [vmem:[%s890] sm:$0xff]
        %v892 = vld [vmem:[%s890 + $0x8] sm:$0xff]
        %v893 = vld [vmem:[%s890 + $0x10] sm:$0xff]
        %v894 = vld [vmem:[%s890 + $0x18] sm:$0xff]
        %v895 = vld [vmem:[%s890 + $0x20] sm:$0xff]
        %v896 = vld [vmem:[%s890 + $0x28] sm:$0xff]
        %v897 = vld [vmem:[%s890 + $0x30] sm:$0xff]
        %v898 = vld [vmem:[%s890 + $0x38] sm:$0xff]
        %v899 = vld [vmem:[%s890 + $0x40] sm:$0xff]
        %v900 = vld [vmem:[%s890 + $0x48] sm:$0xff]
        %v901 = vld [vmem:[%s890 + $0x50] sm:$0xff]
        %v902 = vld [vmem:[%s890 + $0x58] sm:$0xff]
        %v903 = vld [vmem:[%s890 + $0x60] sm:$0xff]
        %v904 = vld [vmem:[%s890 + $0x68] sm:$0xff]
        %v905 = vld [vmem:[%s890 + $0x70] sm:$0xff]
        %v906 = vld [vmem:[%s890 + $0x78] sm:$0xff]
        %v923 = vunpack.c.l.b16 %v891
        %v924 = vunpack.c.h.b16 %v891
        %v925 = vunpack.c.l.b16 %v892
        %v926 = vunpack.c.h.b16 %v892
        %v927 = vunpack.c.l.b16 %v893
        %v928 = vunpack.c.h.b16 %v893
        %v929 = vunpack.c.l.b16 %v894
        %v930 = vunpack.c.h.b16 %v894
        %v931 = vunpack.c.l.b16 %v895
        %v932 = vunpack.c.h.b16 %v895
        %v933 = vunpack.c.l.b16 %v896
        %v934 = vunpack.c.h.b16 %v896
        %v935 = vunpack.c.l.b16 %v897
        %v936 = vunpack.c.h.b16 %v897
        %v937 = vunpack.c.l.b16 %v898
        %v938 = vunpack.c.h.b16 %v898
        %v939 = vunpack.c.l.b16 %v899
        %v940 = vunpack.c.h.b16 %v899
        %v941 = vunpack.c.l.b16 %v900
        %v942 = vunpack.c.h.b16 %v900
        %v943 = vunpack.c.l.b16 %v901
        %v944 = vunpack.c.h.b16 %v901
        %v945 = vunpack.c.l.b16 %v902
        %v946 = vunpack.c.h.b16 %v902
        %v947 = vunpack.c.l.b16 %v903
        %v948 = vunpack.c.h.b16 %v903
        %v949 = vunpack.c.l.b16 %v904
        %v950 = vunpack.c.h.b16 %v904
        %v951 = vunpack.c.l.b16 %v905
        %v952 = vunpack.c.h.b16 %v905
        %v953 = vunpack.c.l.b16 %v906
        %v954 = vunpack.c.h.b16 %v906
        %v955 = vpack.c.b16 %v925, %v923
        %v956 = vpack.c.b16 %v926, %v924
        %v957 = vpack.c.b16 %v929, %v927
        %v958 = vpack.c.b16 %v930, %v928
        %v959 = vpack.c.b16 %v933, %v931
        %v960 = vpack.c.b16 %v934, %v932
        %v961 = vpack.c.b16 %v937, %v935
        %v962 = vpack.c.b16 %v938, %v936
        %v963 = vpack.c.b16 %v941, %v939
        %v964 = vpack.c.b16 %v942, %v940
        %v965 = vpack.c.b16 %v945, %v943
        %v966 = vpack.c.b16 %v946, %v944
        %v967 = vpack.c.b16 %v949, %v947
        %v968 = vpack.c.b16 %v950, %v948
        %v969 = vpack.c.b16 %v953, %v951
        %v970 = vpack.c.b16 %v954, %v952
        %987 = vmatprep.subr.bf16.mxu0 %v956
        %988 = vmatpush1.bf16.msra.mxu0 %v955
        %989 = vmatprep.subr.bf16.mxu0 %v958
        %990 = vmatpush1.bf16.msra.mxu0 %v957
        %991 = vmatprep.subr.bf16.mxu0 %v960
        %992 = vmatpush1.bf16.msra.mxu0 %v959
        %993 = vmatprep.subr.bf16.mxu0 %v962
        %994 = vmatpush1.bf16.msra.mxu0 %v961
        %995 = vmatprep.subr.bf16.mxu0 %v964
        %996 = vmatpush1.bf16.msra.mxu0 %v963
        %997 = vmatprep.subr.bf16.mxu0 %v966
        %998 = vmatpush1.bf16.msra.mxu0 %v965
        %999 = vmatprep.subr.bf16.mxu0 %v968
        %1000 = vmatpush1.bf16.msra.mxu0 %v967
        %1001 = vmatprep.subr.bf16.mxu0 %v970
        %1002 = vmatpush1.bf16.msra.mxu0 %v969
        %1003 = vmatprep.subr.bf16.mxu0 0
        %1004 = vmatpush1.bf16.msra.mxu0 0
        %1005 = vmatprep.subr.bf16.mxu0 0
        %1006 = vmatpush1.bf16.msra.mxu0 0
        %1007 = vmatprep.subr.bf16.mxu0 0
        %1008 = vmatpush1.bf16.msra.mxu0 0
        %1009 = vmatprep.subr.bf16.mxu0 0
        %1010 = vmatpush1.bf16.msra.mxu0 0
        %1011 = vmatprep.subr.bf16.mxu0 0
        %1012 = vmatpush1.bf16.msra.mxu0 0
        %1013 = vmatprep.subr.bf16.mxu0 0
        %1014 = vmatpush1.bf16.msra.mxu0 0
        %1015 = vmatprep.subr.bf16.mxu0 0
        %1016 = vmatpush1.bf16.msra.mxu0 0
        %1017 = vmatprep.subr.bf16.mxu0 0
        %1018 = vmatpush1.bf16.msra.mxu0 0
        %1019 = vmatprep.mubr.bf16.mxu0 0
        %1020 = vmatmul.mubr.bf16.gmra.mrb[0].mxu0 %v477
        %v1021 = vpop.f32.mrb[0].mxu0
        %v1022 = vadd.f32 0.0, %v1021
        %v1023 = vpop.f32.mrb[0].mxu0
        %v1024 = vadd.f32 0.0, %v1023
        %v1025 = vpop.f32.mrb[0].mxu0
        %v1026 = vadd.f32 0.0, %v1025
        %v1027 = vpop.f32.mrb[0].mxu0
        %v1028 = vadd.f32 0.0, %v1027
        %1029 = vdwg.mxu0
        %v1030 = vmax.f32 %v886, %v1022
        %v1031 = vmax.f32 %v887, %v1024
        %v1032 = vmax.f32 %v888, %v1026
        %v1033 = vmax.f32 %v889, %v1028
        %v1034 = vld [vmem:[%s1] sm:$0xff]
        %v1035 = vld [vmem:[%s1 + $0x8] sm:$0xff]
        %1037 = vset.pattern.permute.xlu0 0
        %1038 = vperm.xlu0 %1037, %v1034
        %v1039 = vpop.permute.xlu0 %1038
        %1042 = vset.pattern.permute.xlu0 0
        %1043 = vperm.xlu0 %1042, %v1035
        %v1044 = vpop.permute.xlu0 %1043
        %v1046 = vadd.f32 %v1030, %v1039
        %v1047 = vadd.f32 %v1031, %v1039
        %v1048 = vadd.f32 %v1032, %v1044
        %v1049 = vadd.f32 %v1033, %v1044
        %v1050 = vmax.f32 %v1046, 0.0
        %v1051 = vmax.f32 %v1047, 0.0
        %v1052 = vmax.f32 %v1048, 0.0
        %v1053 = vmax.f32 %v1049, 0.0
        %1054 = vst [vmem:[%s451] sm:$0xff] %v1050
        %1055 = vst [vmem:[%s451 + $0x8] sm:$0xff] %v1051
        %1056 = vst [vmem:[%s451 + $0x10] sm:$0xff] %v1052
        %1057 = vst [vmem:[%s451 + $0x18] sm:$0xff] %v1053
        %s1058 = sand.u32 %s90, 1
        %s1059 = sand.u32 %s90, 1
        %s1060 = smul.addr %s1059, 32
        %s1061 = scalar_lea.vmem [#allocation3], %s1060
        // Predicated region
        $region71: #{convnet_forward.3} parent=65 // pred_check
          %p1062 = pneg %p100
        $region72: #{convnet_forward.3} parent=65 // pred_check_branch
          %1064 = sbr.rel (%p1062) target = $region74
        $region73: #{convnet_forward.3} parent=65 // pred_region
          %s1065 = smul.u32 2, %s14
          %s1066 = smul.addr %s1065, 8
          %s1067 = scalar_lea.vmem %s3, %s1066
          // Predicated region
          $region75: #{convnet_forward.3} parent=73 // pred_check
            _
          $region76: #{convnet_forward.3} parent=73 // pred_check_branch
            %1069 = sbr.rel (0) target = $region78
          $region77: #{convnet_forward.3} parent=73 // pred_region
            // Predicated region
            $region79: #{convnet_forward.3} parent=77 // pred_check
              _
            $region80: #{convnet_forward.3} parent=77 // pred_check_branch
              %1071 = sbr.rel (0) target = $region82
            $region81: #{convnet_forward.3} parent=77 // pred_region
              loop: start=0, step=1, limit=1
              $region83: #{convnet_forward.3} parent=81 // loop_pre_header
                _
              $region84: #{convnet_forward.3} parent=81 // loop_header
                %s1073 = sphi 0, %s1077
                %p1074 = scmp.ge.s32.totalorder %s1073, 1
                %s1078 = sphi %s1061, %s1061
                %s1079 = sphi %s1067, %s1067
              $region85: #{convnet_forward.3} parent=81 // loop_header_branch
                %1076 = sbr.rel (%p1074) target = $region89
              $region86: #{convnet_forward.3} parent=81 // loop_body
                %v1080 = vld [vmem:[%s1078] sm:$0xff]
                %1081 = vst [vmem:[%s1079] sm:$0xff] %v1080
                %v1082 = vld [vmem:[%s1078 + $0x8] sm:$0xff]
                %1083 = vst [vmem:[%s1079 + $0x8] sm:$0xff] %v1082
                %v1084 = vld [vmem:[%s1078 + $0x10] sm:$0xff]
                %1085 = vst [vmem:[%s1079 + $0x20] sm:$0xff] %v1084
                %v1086 = vld [vmem:[%s1078 + $0x18] sm:$0xff]
                %1087 = vst [vmem:[%s1079 + $0x28] sm:$0xff] %v1086
              $region87: #{convnet_forward.3} parent=81 // loop_footer
                %s1077 = sadd.s32 1, %s1073
              $region88: #{convnet_forward.3} parent=81 // loop_footer_branch
                %1072 = sbr.rel target = $region84
              $region89: #{convnet_forward.3} parent=81 // loop_exit
                _
            $region82: #{convnet_forward.3} parent=77 // pred_fallthru
              _
            // Predicated region
            $region90: #{convnet_forward.3} parent=77 // pred_check
              _
            $region91: #{convnet_forward.3} parent=77 // pred_check_branch
              %1089 = sbr.rel target = $region93
            $region92: #{convnet_forward.3} parent=77 // pred_region
              _
            $region93: #{convnet_forward.3} parent=77 // pred_fallthru
              _
          $region78: #{convnet_forward.3} parent=73 // pred_fallthru
            _
          %1090 = vnop
        $region74: #{convnet_forward.3} parent=65 // pred_fallthru
          _
      $region66: #{convnet_forward.3} parent=5 // pred_fallthru
        _
      %p1091 = scmp.le.s32.totalorder 2, %s9
      // Predicated region
      $region94: #{convnet_forward.3} parent=5 // pred_check
        %p1092 = pneg %p1091
      $region95: #{convnet_forward.3} parent=5 // pred_check_branch
        %1094 = sbr.rel (%p1092) target = $region97
      $region96: #{convnet_forward.3} parent=5 // pred_region
        %s1095 = ssub.s32 %s9, 2
        // Predicated region
        $region98: #{convnet_forward.3} parent=96 // pred_check
          %p1096 = pneg %p106
        $region99: #{convnet_forward.3} parent=96 // pred_check_branch
          %1098 = sbr.rel (%p1096) target = $region101
        $region100: #{convnet_forward.3} parent=96 // pred_region
          %s1099 = sand.u32 %s91, 1
          %s1100 = sand.u32 %s91, 1
          %s1101 = smul.addr %s1100, 32
          %s1102 = scalar_lea.vmem [#allocation3], %s1101
        $region101: #{convnet_forward.3} parent=96 // pred_fallthru
          _
      $region97: #{convnet_forward.3} parent=5 // pred_fallthru
        _
    $region6: #{convnet_forward.3} parent=1 // loop_footer
      %s13 = sadd.s32 1, %s9
    $region7: #{convnet_forward.3} parent=1 // loop_footer_branch
      %8 = sbr.rel target = $region3
    $region8: #{convnet_forward.3} parent=1 // loop_exit
      _

// kernel: convnet_forward.4
$region0: #{convnet_forward.4}
  #allocation0 [shape = 'u32[]', space=smem, size = 0x4, offset = 0x4, fixed_abs, tag = 'smem constant byte address 0x4 - core index']
  #allocation1 [shape = 'u32[144,128]{1,0:T(1,128)}', space=vmem, size = 0x12000, scoped, tag = 'internal scratch']
  %s0 = inlined_call_operand.vmem [shape: bf16[16,256], index: 0, kind: input, shape index: {}]
  %s1 = inlined_call_operand.vmem [shape: f32[16,1], index: 1, kind: input, shape index: {}]
  %s2 = inlined_call_operand.vmem [shape: bf16[4,256,128], index: 2, kind: input, shape index: {}]
  %s3 = inlined_call_operand.vmem [shape: f32[16,128], index: 3, kind: output, shape index: {}]
  %s4 = sld [smem:[#allocation0]]
  $region22: #{convnet_forward.4} parent=0
    _
  %s6 = ssub.s32 1, %s4
  %s7 = scalar_select 0, %s6, %s4
  // Predicated region
  $region2: #{convnet_forward.4} parent=0 // pred_check
    _
  $region3: #{convnet_forward.4} parent=0 // pred_check_branch
    %9 = sbr.rel (0) target = $region5
  $region4: #{convnet_forward.4} parent=0 // pred_region
    _
  $region5: #{convnet_forward.4} parent=0 // pred_fallthru
    _
  // Predicated region
  $region6: #{convnet_forward.4} parent=0 // pred_check
    _
  $region7: #{convnet_forward.4} parent=0 // pred_check_branch
    %11 = sbr.rel (0) target = $region9
  $region8: #{convnet_forward.4} parent=0 // pred_region
    _
  $region9: #{convnet_forward.4} parent=0 // pred_fallthru
    _
  // Predicated region
  $region10: #{convnet_forward.4} parent=0 // pred_check
    _
  $region11: #{convnet_forward.4} parent=0 // pred_check_branch
    %13 = sbr.rel (0) target = $region13
  $region12: #{convnet_forward.4} parent=0 // pred_region
    _
  $region13: #{convnet_forward.4} parent=0 // pred_fallthru
    _
  %v15 = vld [vmem:[%s0] sm:$0xff]
  %v16 = vld [vmem:[%s0 + $0x8] sm:$0xff]
  %v17 = vld [vmem:[%s2] sm:$0xf]
  %v18 = vld [vmem:[%s2 + $0x4] sm:$0xf]
  %v19 = vld [vmem:[%s2 + $0x8] sm:$0xf]
  %v20 = vld [vmem:[%s2 + $0xc] sm:$0xf]
  %v21 = vld [vmem:[%s2 + $0x10] sm:$0xf]
  %v22 = vld [vmem:[%s2 + $0x14] sm:$0xf]
  %v23 = vld [vmem:[%s2 + $0x18] sm:$0xf]
  %v24 = vld [vmem:[%s2 + $0x1c] sm:$0xf]
  %v25 = vld [vmem:[%s2 + $0x20] sm:$0xf]
  %v26 = vld [vmem:[%s2 + $0x24] sm:$0xf]
  %v27 = vld [vmem:[%s2 + $0x28] sm:$0xf]
  %v28 = vld [vmem:[%s2 + $0x2c] sm:$0xf]
  %v29 = vld [vmem:[%s2 + $0x30] sm:$0xf]
  %v30 = vld [vmem:[%s2 + $0x34] sm:$0xf]
  %v31 = vld [vmem:[%s2 + $0x38] sm:$0xf]
  %v32 = vld [vmem:[%s2 + $0x3c] sm:$0xf]
  %v33 = vld [vmem:[%s2 + $0x40] sm:$0xf]
  %v34 = vld [vmem:[%s2 + $0x44] sm:$0xf]
  %v35 = vld [vmem:[%s2 + $0x48] sm:$0xf]
  %v36 = vld [vmem:[%s2 + $0x4c] sm:$0xf]
  %v37 = vld [vmem:[%s2 + $0x50] sm:$0xf]
  %v38 = vld [vmem:[%s2 + $0x54] sm:$0xf]
  %v39 = vld [vmem:[%s2 + $0x58] sm:$0xf]
  %v40 = vld [vmem:[%s2 + $0x5c] sm:$0xf]
  %v41 = vld [vmem:[%s2 + $0x60] sm:$0xf]
  %v42 = vld [vmem:[%s2 + $0x64] sm:$0xf]
  %v43 = vld [vmem:[%s2 + $0x68] sm:$0xf]
  %v44 = vld [vmem:[%s2 + $0x6c] sm:$0xf]
  %v45 = vld [vmem:[%s2 + $0x70] sm:$0xf]
  %v46 = vld [vmem:[%s2 + $0x74] sm:$0xf]
  %v47 = vld [vmem:[%s2 + $0x78] sm:$0xf]
  %v48 = vld [vmem:[%s2 + $0x7c] sm:$0xf]
  %v51 = vunpack.c.l.b16 %v15
  %v52 = vunpack.c.h.b16 %v15
  %v53 = vunpack.c.l.b16 %v16
  %v54 = vunpack.c.h.b16 %v16
  %v55 = vpack.c.b16 %v53, %v51
  %v56 = vpack.c.b16 %v54, %v52
  %v91 = vunpack.c.l.b16 %v17
  %v92 = vunpack.c.l.b16 %v18
  %v93 = vunpack.c.l.b16 %v19
  %v94 = vunpack.c.l.b16 %v20
  %v95 = vunpack.c.l.b16 %v21
  %v96 = vunpack.c.l.b16 %v22
  %v97 = vunpack.c.l.b16 %v23
  %v98 = vunpack.c.l.b16 %v24
  %v99 = vunpack.c.l.b16 %v25
  %v100 = vunpack.c.l.b16 %v26
  %v101 = vunpack.c.l.b16 %v27
  %v102 = vunpack.c.l.b16 %v28
  %v103 = vunpack.c.l.b16 %v29
  %v104 = vunpack.c.l.b16 %v30
  %v105 = vunpack.c.l.b16 %v31
  %v106 = vunpack.c.l.b16 %v32
  %v107 = vunpack.c.l.b16 %v33
  %v108 = vunpack.c.l.b16 %v34
  %v109 = vunpack.c.l.b16 %v35
  %v110 = vunpack.c.l.b16 %v36
  %v111 = vunpack.c.l.b16 %v37
  %v112 = vunpack.c.l.b16 %v38
  %v113 = vunpack.c.l.b16 %v39
  %v114 = vunpack.c.l.b16 %v40
  %v115 = vunpack.c.l.b16 %v41
  %v116 = vunpack.c.l.b16 %v42
  %v117 = vunpack.c.l.b16 %v43
  %v118 = vunpack.c.l.b16 %v44
  %v119 = vunpack.c.l.b16 %v45
  %v120 = vunpack.c.l.b16 %v46
  %v121 = vunpack.c.l.b16 %v47
  %v122 = vunpack.c.l.b16 %v48
  %v123 = vpack.c.b16 %v92, %v91
  %v124 = vpack.c.b16 %v94, %v93
  %v125 = vpack.c.b16 %v96, %v95
  %v126 = vpack.c.b16 %v98, %v97
  %v127 = vpack.c.b16 %v100, %v99
  %v128 = vpack.c.b16 %v102, %v101
  %v129 = vpack.c.b16 %v104, %v103
  %v130 = vpack.c.b16 %v106, %v105
  %v131 = vpack.c.b16 %v108, %v107
  %v132 = vpack.c.b16 %v110, %v109
  %v133 = vpack.c.b16 %v112, %v111
  %v134 = vpack.c.b16 %v114, %v113
  %v135 = vpack.c.b16 %v116, %v115
  %v136 = vpack.c.b16 %v118, %v117
  %v137 = vpack.c.b16 %v120, %v119
  %v138 = vpack.c.b16 %v122, %v121
  %155 = vmatprep.subr.bf16.mxu0 0
  %156 = vmatpush1.bf16.msra.mxu0 %v123
  %157 = vmatprep.subr.bf16.mxu0 0
  %158 = vmatpush1.bf16.msra.mxu0 %v124
  %159 = vmatprep.subr.bf16.mxu0 0
  %160 = vmatpush1.bf16.msra.mxu0 %v125
  %161 = vmatprep.subr.bf16.mxu0 0
  %162 = vmatpush1.bf16.msra.mxu0 %v126
  %163 = vmatprep.subr.bf16.mxu0 0
  %164 = vmatpush1.bf16.msra.mxu0 %v127
  %165 = vmatprep.subr.bf16.mxu0 0
  %166 = vmatpush1.bf16.msra.mxu0 %v128
  %167 = vmatprep.subr.bf16.mxu0 0
  %168 = vmatpush1.bf16.msra.mxu0 %v129
  %169 = vmatprep.subr.bf16.mxu0 0
  %170 = vmatpush1.bf16.msra.mxu0 %v130
  %171 = vmatprep.subr.bf16.mxu0 0
  %172 = vmatpush1.bf16.msra.mxu0 %v131
  %173 = vmatprep.subr.bf16.mxu0 0
  %174 = vmatpush1.bf16.msra.mxu0 %v132
  %175 = vmatprep.subr.bf16.mxu0 0
  %176 = vmatpush1.bf16.msra.mxu0 %v133
  %177 = vmatprep.subr.bf16.mxu0 0
  %178 = vmatpush1.bf16.msra.mxu0 %v134
  %179 = vmatprep.subr.bf16.mxu0 0
  %180 = vmatpush1.bf16.msra.mxu0 %v135
  %181 = vmatprep.subr.bf16.mxu0 0
  %182 = vmatpush1.bf16.msra.mxu0 %v136
  %183 = vmatprep.subr.bf16.mxu0 0
  %184 = vmatpush1.bf16.msra.mxu0 %v137
  %185 = vmatprep.subr.bf16.mxu0 0
  %186 = vmatpush1.bf16.msra.mxu0 %v138
  %187 = vmatprep.mubr.bf16.mxu0 %v56
  %188 = vmatmul.mubr.bf16.gmra.mrb[0].mxu0 %v55
  %v189 = vpop.f32.mrb[0].mxu0
  %v190 = vadd.f32 0.0, %v189
  %v191 = vpop.f32.mrb[0].mxu0
  %v192 = vpop.f32.mrb[0].mxu0
  %v193 = vadd.f32 0.0, %v192
  %v194 = vpop.f32.mrb[0].mxu0
  %195 = vdwg.mxu0
  %s196 = scalar_lea.vmem %s2, 128
  %v197 = vld [vmem:[%s196] sm:$0xf]
  %v198 = vld [vmem:[%s196 + $0x4] sm:$0xf]
  %v199 = vld [vmem:[%s196 + $0x8] sm:$0xf]
  %v200 = vld [vmem:[%s196 + $0xc] sm:$0xf]
  %v201 = vld [vmem:[%s196 + $0x10] sm:$0xf]
  %v202 = vld [vmem:[%s196 + $0x14] sm:$0xf]
  %v203 = vld [vmem:[%s196 + $0x18] sm:$0xf]
  %v204 = vld [vmem:[%s196 + $0x1c] sm:$0xf]
  %v205 = vld [vmem:[%s196 + $0x20] sm:$0xf]
  %v206 = vld [vmem:[%s196 + $0x24] sm:$0xf]
  %v207 = vld [vmem:[%s196 + $0x28] sm:$0xf]
  %v208 = vld [vmem:[%s196 + $0x2c] sm:$0xf]
  %v209 = vld [vmem:[%s196 + $0x30] sm:$0xf]
  %v210 = vld [vmem:[%s196 + $0x34] sm:$0xf]
  %v211 = vld [vmem:[%s196 + $0x38] sm:$0xf]
  %v212 = vld [vmem:[%s196 + $0x3c] sm:$0xf]
  %v213 = vld [vmem:[%s196 + $0x40] sm:$0xf]
  %v214 = vld [vmem:[%s196 + $0x44] sm:$0xf]
  %v215 = vld [vmem:[%s196 + $0x48] sm:$0xf]
  %v216 = vld [vmem:[%s196 + $0x4c] sm:$0xf]
  %v217 = vld [vmem:[%s196 + $0x50] sm:$0xf]
  %v218 = vld [vmem:[%s196 + $0x54] sm:$0xf]
  %v219 = vld [vmem:[%s196 + $0x58] sm:$0xf]
  %v220 = vld [vmem:[%s196 + $0x5c] sm:$0xf]
  %v221 = vld [vmem:[%s196 + $0x60] sm:$0xf]
  %v222 = vld [vmem:[%s196 + $0x64] sm:$0xf]
  %v223 = vld [vmem:[%s196 + $0x68] sm:$0xf]
  %v224 = vld [vmem:[%s196 + $0x6c] sm:$0xf]
  %v225 = vld [vmem:[%s196 + $0x70] sm:$0xf]
  %v226 = vld [vmem:[%s196 + $0x74] sm:$0xf]
  %v227 = vld [vmem:[%s196 + $0x78] sm:$0xf]
  %v228 = vld [vmem:[%s196 + $0x7c] sm:$0xf]
  %v261 = vunpack.c.l.b16 %v197
  %v262 = vunpack.c.l.b16 %v198
  %v263 = vunpack.c.l.b16 %v199
  %v264 = vunpack.c.l.b16 %v200
  %v265 = vunpack.c.l.b16 %v201
  %v266 = vunpack.c.l.b16 %v202
  %v267 = vunpack.c.l.b16 %v203
  %v268 = vunpack.c.l.b16 %v204
  %v269 = vunpack.c.l.b16 %v205
  %v270 = vunpack.c.l.b16 %v206
  %v271 = vunpack.c.l.b16 %v207
  %v272 = vunpack.c.l.b16 %v208
  %v273 = vunpack.c.l.b16 %v209
  %v274 = vunpack.c.l.b16 %v210
  %v275 = vunpack.c.l.b16 %v211
  %v276 = vunpack.c.l.b16 %v212
  %v277 = vunpack.c.l.b16 %v213
  %v278 = vunpack.c.l.b16 %v214
  %v279 = vunpack.c.l.b16 %v215
  %v280 = vunpack.c.l.b16 %v216
  %v281 = vunpack.c.l.b16 %v217
  %v282 = vunpack.c.l.b16 %v218
  %v283 = vunpack.c.l.b16 %v219
  %v284 = vunpack.c.l.b16 %v220
  %v285 = vunpack.c.l.b16 %v221
  %v286 = vunpack.c.l.b16 %v222
  %v287 = vunpack.c.l.b16 %v223
  %v288 = vunpack.c.l.b16 %v224
  %v289 = vunpack.c.l.b16 %v225
  %v290 = vunpack.c.l.b16 %v226
  %v291 = vunpack.c.l.b16 %v227
  %v292 = vunpack.c.l.b16 %v228
  %v293 = vpack.c.b16 %v262, %v261
  %v294 = vpack.c.b16 %v264, %v263
  %v295 = vpack.c.b16 %v266, %v265
  %v296 = vpack.c.b16 %v268, %v267
  %v297 = vpack.c.b16 %v270, %v269
  %v298 = vpack.c.b16 %v272, %v271
  %v299 = vpack.c.b16 %v274, %v273
  %v300 = vpack.c.b16 %v276, %v275
  %v301 = vpack.c.b16 %v278, %v277
  %v302 = vpack.c.b16 %v280, %v279
  %v303 = vpack.c.b16 %v282, %v281
  %v304 = vpack.c.b16 %v284, %v283
  %v305 = vpack.c.b16 %v286, %v285
  %v306 = vpack.c.b16 %v288, %v287
  %v307 = vpack.c.b16 %v290, %v289
  %v308 = vpack.c.b16 %v292, %v291
  %325 = vmatprep.subr.bf16.mxu0 0
  %326 = vmatpush1.bf16.msra.mxu0 %v293
  %327 = vmatprep.subr.bf16.mxu0 0
  %328 = vmatpush1.bf16.msra.mxu0 %v294
  %329 = vmatprep.subr.bf16.mxu0 0
  %330 = vmatpush1.bf16.msra.mxu0 %v295
  %331 = vmatprep.subr.bf16.mxu0 0
  %332 = vmatpush1.bf16.msra.mxu0 %v296
  %333 = vmatprep.subr.bf16.mxu0 0
  %334 = vmatpush1.bf16.msra.mxu0 %v297
  %335 = vmatprep.subr.bf16.mxu0 0
  %336 = vmatpush1.bf16.msra.mxu0 %v298
  %337 = vmatprep.subr.bf16.mxu0 0
  %338 = vmatpush1.bf16.msra.mxu0 %v299
  %339 = vmatprep.subr.bf16.mxu0 0
  %340 = vmatpush1.bf16.msra.mxu0 %v300
  %341 = vmatprep.subr.bf16.mxu0 0
  %342 = vmatpush1.bf16.msra.mxu0 %v301
  %343 = vmatprep.subr.bf16.mxu0 0
  %344 = vmatpush1.bf16.msra.mxu0 %v302
  %345 = vmatprep.subr.bf16.mxu0 0
  %346 = vmatpush1.bf16.msra.mxu0 %v303
  %347 = vmatprep.subr.bf16.mxu0 0
  %348 = vmatpush1.bf16.msra.mxu0 %v304
  %349 = vmatprep.subr.bf16.mxu0 0
  %350 = vmatpush1.bf16.msra.mxu0 %v305
  %351 = vmatprep.subr.bf16.mxu0 0
  %352 = vmatpush1.bf16.msra.mxu0 %v306
  %353 = vmatprep.subr.bf16.mxu0 0
  %354 = vmatpush1.bf16.msra.mxu0 %v307
  %355 = vmatprep.subr.bf16.mxu0 0
  %356 = vmatpush1.bf16.msra.mxu0 %v308
  %357 = vmatprep.mubr.bf16.mxu0 %v56
  %358 = vmatmul.mubr.bf16.gmra.mrb[0].mxu0 %v55
  %v359 = vpop.f32.mrb[0].mxu0
  %v360 = vadd.f32 0.0, %v359
  %v361 = vpop.f32.mrb[0].mxu0
  %v362 = vpop.f32.mrb[0].mxu0
  %v363 = vadd.f32 0.0, %v362
  %v364 = vpop.f32.mrb[0].mxu0
  %365 = vdwg.mxu0
  %v366 = vmax.f32 %v190, %v360
  %v367 = vmax.f32 %v193, %v363
  %s368 = scalar_lea.vmem %s2, 256
  %v369 = vld [vmem:[%s368] sm:$0xf]
  %v370 = vld [vmem:[%s368 + $0x4] sm:$0xf]
  %v371 = vld [vmem:[%s368 + $0x8] sm:$0xf]
  %v372 = vld [vmem:[%s368 + $0xc] sm:$0xf]
  %v373 = vld [vmem:[%s368 + $0x10] sm:$0xf]
  %v374 = vld [vmem:[%s368 + $0x14] sm:$0xf]
  %v375 = vld [vmem:[%s368 + $0x18] sm:$0xf]
  %v376 = vld [vmem:[%s368 + $0x1c] sm:$0xf]
  %v377 = vld [vmem:[%s368 + $0x20] sm:$0xf]
  %v378 = vld [vmem:[%s368 + $0x24] sm:$0xf]
  %v379 = vld [vmem:[%s368 + $0x28] sm:$0xf]
  %v380 = vld [vmem:[%s368 + $0x2c] sm:$0xf]
  %v381 = vld [vmem:[%s368 + $0x30] sm:$0xf]
  %v382 = vld [vmem:[%s368 + $0x34] sm:$0xf]
  %v383 = vld [vmem:[%s368 + $0x38] sm:$0xf]
  %v384 = vld [vmem:[%s368 + $0x3c] sm:$0xf]
  %v385 = vld [vmem:[%s368 + $0x40] sm:$0xf]
  %v386 = vld [vmem:[%s368 + $0x44] sm:$0xf]
  %v387 = vld [vmem:[%s368 + $0x48] sm:$0xf]
  %v388 = vld [vmem:[%s368 + $0x4c] sm:$0xf]
  %v389 = vld [vmem:[%s368 + $0x50] sm:$0xf]
  %v390 = vld [vmem:[%s368 + $0x54] sm:$0xf]
  %v391 = vld [vmem:[%s368 + $0x58] sm:$0xf]
  %v392 = vld [vmem:[%s368 + $0x5c] sm:$0xf]
  %v393 = vld [vmem:[%s368 + $0x60] sm:$0xf]
  %v394 = vld [vmem:[%s368 + $0x64] sm:$0xf]
  %v395 = vld [vmem:[%s368 + $0x68] sm:$0xf]
  %v396 = vld [vmem:[%s368 + $0x6c] sm:$0xf]
  %v397 = vld [vmem:[%s368 + $0x70] sm:$0xf]
  %v398 = vld [vmem:[%s368 + $0x74] sm:$0xf]
  %v399 = vld [vmem:[%s368 + $0x78] sm:$0xf]
  %v400 = vld [vmem:[%s368 + $0x7c] sm:$0xf]
  %v433 = vunpack.c.l.b16 %v369
  %v434 = vunpack.c.l.b16 %v370
  %v435 = vunpack.c.l.b16 %v371
  %v436 = vunpack.c.l.b16 %v372
  %v437 = vunpack.c.l.b16 %v373
  %v438 = vunpack.c.l.b16 %v374
  %v439 = vunpack.c.l.b16 %v375
  %v440 = vunpack.c.l.b16 %v376
  %v441 = vunpack.c.l.b16 %v377
  %v442 = vunpack.c.l.b16 %v378
  %v443 = vunpack.c.l.b16 %v379
  %v444 = vunpack.c.l.b16 %v380
  %v445 = vunpack.c.l.b16 %v381
  %v446 = vunpack.c.l.b16 %v382
  %v447 = vunpack.c.l.b16 %v383
  %v448 = vunpack.c.l.b16 %v384
  %v449 = vunpack.c.l.b16 %v385
  %v450 = vunpack.c.l.b16 %v386
  %v451 = vunpack.c.l.b16 %v387
  %v452 = vunpack.c.l.b16 %v388
  %v453 = vunpack.c.l.b16 %v389
  %v454 = vunpack.c.l.b16 %v390
  %v455 = vunpack.c.l.b16 %v391
  %v456 = vunpack.c.l.b16 %v392
  %v457 = vunpack.c.l.b16 %v393
  %v458 = vunpack.c.l.b16 %v394
  %v459 = vunpack.c.l.b16 %v395
  %v460 = vunpack.c.l.b16 %v396
  %v461 = vunpack.c.l.b16 %v397
  %v462 = vunpack.c.l.b16 %v398
  %v463 = vunpack.c.l.b16 %v399
  %v464 = vunpack.c.l.b16 %v400
  %v465 = vpack.c.b16 %v434, %v433
  %v466 = vpack.c.b16 %v436, %v435
  %v467 = vpack.c.b16 %v438, %v437
  %v468 = vpack.c.b16 %v440, %v439
  %v469 = vpack.c.b16 %v442, %v441
  %v470 = vpack.c.b16 %v444, %v443
  %v471 = vpack.c.b16 %v446, %v445
  %v472 = vpack.c.b16 %v448, %v447
  %v473 = vpack.c.b16 %v450, %v449
  %v474 = vpack.c.b16 %v452, %v451
  %v475 = vpack.c.b16 %v454, %v453
  %v476 = vpack.c.b16 %v456, %v455
  %v477 = vpack.c.b16 %v458, %v457
  %v478 = vpack.c.b16 %v460, %v459
  %v479 = vpack.c.b16 %v462, %v461
  %v480 = vpack.c.b16 %v464, %v463
  %497 = vmatprep.subr.bf16.mxu0 0
  %498 = vmatpush1.bf16.msra.mxu0 %v465
  %499 = vmatprep.subr.bf16.mxu0 0
  %500 = vmatpush1.bf16.msra.mxu0 %v466
  %501 = vmatprep.subr.bf16.mxu0 0
  %502 = vmatpush1.bf16.msra.mxu0 %v467
  %503 = vmatprep.subr.bf16.mxu0 0
  %504 = vmatpush1.bf16.msra.mxu0 %v468
  %505 = vmatprep.subr.bf16.mxu0 0
  %506 = vmatpush1.bf16.msra.mxu0 %v469
  %507 = vmatprep.subr.bf16.mxu0 0
  %508 = vmatpush1.bf16.msra.mxu0 %v470
  %509 = vmatprep.subr.bf16.mxu0 0
  %510 = vmatpush1.bf16.msra.mxu0 %v471
  %511 = vmatprep.subr.bf16.mxu0 0
  %512 = vmatpush1.bf16.msra.mxu0 %v472
  %513 = vmatprep.subr.bf16.mxu0 0
  %514 = vmatpush1.bf16.msra.mxu0 %v473
  %515 = vmatprep.subr.bf16.mxu0 0
  %516 = vmatpush1.bf16.msra.mxu0 %v474
  %517 = vmatprep.subr.bf16.mxu0 0
  %518 = vmatpush1.bf16.msra.mxu0 %v475
  %519 = vmatprep.subr.bf16.mxu0 0
  %520 = vmatpush1.bf16.msra.mxu0 %v476
  %521 = vmatprep.subr.bf16.mxu0 0
  %522 = vmatpush1.bf16.msra.mxu0 %v477
  %523 = vmatprep.subr.bf16.mxu0 0
  %524 = vmatpush1.bf16.msra.mxu0 %v478
  %525 = vmatprep.subr.bf16.mxu0 0
  %526 = vmatpush1.bf16.msra.mxu0 %v479
  %527 = vmatprep.subr.bf16.mxu0 0
  %528 = vmatpush1.bf16.msra.mxu0 %v480
  %529 = vmatprep.mubr.bf16.mxu0 %v56
  %530 = vmatmul.mubr.bf16.gmra.mrb[0].mxu0 %v55
  %v531 = vpop.f32.mrb[0].mxu0
  %v532 = vadd.f32 0.0, %v531
  %v533 = vpop.f32.mrb[0].mxu0
  %v534 = vpop.f32.mrb[0].mxu0
  %v535 = vadd.f32 0.0, %v534
  %v536 = vpop.f32.mrb[0].mxu0
  %537 = vdwg.mxu0
  %v538 = vmax.f32 %v366, %v532
  %v539 = vmax.f32 %v367, %v535
  %s540 = scalar_lea.vmem %s2, 384
  %v541 = vld [vmem:[%s540] sm:$0xf]
  %v542 = vld [vmem:[%s540 + $0x4] sm:$0xf]
  %v543 = vld [vmem:[%s540 + $0x8] sm:$0xf]
  %v544 = vld [vmem:[%s540 + $0xc] sm:$0xf]
  %v545 = vld [vmem:[%s540 + $0x10] sm:$0xf]
  %v546 = vld [vmem:[%s540 + $0x14] sm:$0xf]
  %v547 = vld [vmem:[%s540 + $0x18] sm:$0xf]
  %v548 = vld [vmem:[%s540 + $0x1c] sm:$0xf]
  %v549 = vld [vmem:[%s540 + $0x20] sm:$0xf]
  %v550 = vld [vmem:[%s540 + $0x24] sm:$0xf]
  %v551 = vld [vmem:[%s540 + $0x28] sm:$0xf]
  %v552 = vld [vmem:[%s540 + $0x2c] sm:$0xf]
  %v553 = vld [vmem:[%s540 + $0x30] sm:$0xf]
  %v554 = vld [vmem:[%s540 + $0x34] sm:$0xf]
  %v555 = vld [vmem:[%s540 + $0x38] sm:$0xf]
  %v556 = vld [vmem:[%s540 + $0x3c] sm:$0xf]
  %v557 = vld [vmem:[%s540 + $0x40] sm:$0xf]
  %v558 = vld [vmem:[%s540 + $0x44] sm:$0xf]
  %v559 = vld [vmem:[%s540 + $0x48] sm:$0xf]
  %v560 = vld [vmem:[%s540 + $0x4c] sm:$0xf]
  %v561 = vld [vmem:[%s540 + $0x50] sm:$0xf]
  %v562 = vld [vmem:[%s540 + $0x54] sm:$0xf]
  %v563 = vld [vmem:[%s540 + $0x58] sm:$0xf]
  %v564 = vld [vmem:[%s540 + $0x5c] sm:$0xf]
  %v565 = vld [vmem:[%s540 + $0x60] sm:$0xf]
  %v566 = vld [vmem:[%s540 + $0x64] sm:$0xf]
  %v567 = vld [vmem:[%s540 + $0x68] sm:$0xf]
  %v568 = vld [vmem:[%s540 + $0x6c] sm:$0xf]
  %v569 = vld [vmem:[%s540 + $0x70] sm:$0xf]
  %v570 = vld [vmem:[%s540 + $0x74] sm:$0xf]
  %v571 = vld [vmem:[%s540 + $0x78] sm:$0xf]
  %v572 = vld [vmem:[%s540 + $0x7c] sm:$0xf]
  %v605 = vunpack.c.l.b16 %v541
  %v606 = vunpack.c.l.b16 %v542
  %v607 = vunpack.c.l.b16 %v543
  %v608 = vunpack.c.l.b16 %v544
  %v609 = vunpack.c.l.b16 %v545
  %v610 = vunpack.c.l.b16 %v546
  %v611 = vunpack.c.l.b16 %v547
  %v612 = vunpack.c.l.b16 %v548
  %v613 = vunpack.c.l.b16 %v549
  %v614 = vunpack.c.l.b16 %v550
  %v615 = vunpack.c.l.b16 %v551
  %v616 = vunpack.c.l.b16 %v552
  %v617 = vunpack.c.l.b16 %v553
  %v618 = vunpack.c.l.b16 %v554
  %v619 = vunpack.c.l.b16 %v555
  %v620 = vunpack.c.l.b16 %v556
  %v621 = vunpack.c.l.b16 %v557
  %v622 = vunpack.c.l.b16 %v558
  %v623 = vunpack.c.l.b16 %v559
  %v624 = vunpack.c.l.b16 %v560
  %v625 = vunpack.c.l.b16 %v561
  %v626 = vunpack.c.l.b16 %v562
  %v627 = vunpack.c.l.b16 %v563
  %v628 = vunpack.c.l.b16 %v564
  %v629 = vunpack.c.l.b16 %v565
  %v630 = vunpack.c.l.b16 %v566
  %v631 = vunpack.c.l.b16 %v567
  %v632 = vunpack.c.l.b16 %v568
  %v633 = vunpack.c.l.b16 %v569
  %v634 = vunpack.c.l.b16 %v570
  %v635 = vunpack.c.l.b16 %v571
  %v636 = vunpack.c.l.b16 %v572
  %v637 = vpack.c.b16 %v606, %v605
  %v638 = vpack.c.b16 %v608, %v607
  %v639 = vpack.c.b16 %v610, %v609
  %v640 = vpack.c.b16 %v612, %v611
  %v641 = vpack.c.b16 %v614, %v613
  %v642 = vpack.c.b16 %v616, %v615
  %v643 = vpack.c.b16 %v618, %v617
  %v644 = vpack.c.b16 %v620, %v619
  %v645 = vpack.c.b16 %v622, %v621
  %v646 = vpack.c.b16 %v624, %v623
  %v647 = vpack.c.b16 %v626, %v625
  %v648 = vpack.c.b16 %v628, %v627
  %v649 = vpack.c.b16 %v630, %v629
  %v650 = vpack.c.b16 %v632, %v631
  %v651 = vpack.c.b16 %v634, %v633
  %v652 = vpack.c.b16 %v636, %v635
  %669 = vmatprep.subr.bf16.mxu0 0
  %670 = vmatpush1.bf16.msra.mxu0 %v637
  %671 = vmatprep.subr.bf16.mxu0 0
  %672 = vmatpush1.bf16.msra.mxu0 %v638
  %673 = vmatprep.subr.bf16.mxu0 0
  %674 = vmatpush1.bf16.msra.mxu0 %v639
  %675 = vmatprep.subr.bf16.mxu0 0
  %676 = vmatpush1.bf16.msra.mxu0 %v640
  %677 = vmatprep.subr.bf16.mxu0 0
  %678 = vmatpush1.bf16.msra.mxu0 %v641
  %679 = vmatprep.subr.bf16.mxu0 0
  %680 = vmatpush1.bf16.msra.mxu0 %v642
  %681 = vmatprep.subr.bf16.mxu0 0
  %682 = vmatpush1.bf16.msra.mxu0 %v643
  %683 = vmatprep.subr.bf16.mxu0 0
  %684 = vmatpush1.bf16.msra.mxu0 %v644
  %685 = vmatprep.subr.bf16.mxu0 0
  %686 = vmatpush1.bf16.msra.mxu0 %v645
  %687 = vmatprep.subr.bf16.mxu0 0
  %688 = vmatpush1.bf16.msra.mxu0 %v646
  %689 = vmatprep.subr.bf16.mxu0 0
  %690 = vmatpush1.bf16.msra.mxu0 %v647
  %691 = vmatprep.subr.bf16.mxu0 0
  %692 = vmatpush1.bf16.msra.mxu0 %v648
  %693 = vmatprep.subr.bf16.mxu0 0
  %694 = vmatpush1.bf16.msra.mxu0 %v649
  %695 = vmatprep.subr.bf16.mxu0 0
  %696 = vmatpush1.bf16.msra.mxu0 %v650
  %697 = vmatprep.subr.bf16.mxu0 0
  %698 = vmatpush1.bf16.msra.mxu0 %v651
  %699 = vmatprep.subr.bf16.mxu0 0
  %700 = vmatpush1.bf16.msra.mxu0 %v652
  %701 = vmatprep.mubr.bf16.mxu0 %v56
  %702 = vmatmul.mubr.bf16.gmra.mrb[0].mxu0 %v55
  %v703 = vpop.f32.mrb[0].mxu0
  %v704 = vadd.f32 0.0, %v703
  %v705 = vpop.f32.mrb[0].mxu0
  %v706 = vpop.f32.mrb[0].mxu0
  %v707 = vadd.f32 0.0, %v706
  %v708 = vpop.f32.mrb[0].mxu0
  %709 = vdwg.mxu0
  %v710 = vmax.f32 %v538, %v704
  %v711 = vmax.f32 %v539, %v707
  %v712 = vld [vmem:[%s1] sm:$0xff]
  %v713 = vld [vmem:[%s1 + $0x8] sm:$0xff]
  %715 = vset.pattern.permute.xlu0 0
  %716 = vperm.xlu0 %715, %v712
  %v717 = vpop.permute.xlu0 %716
  %720 = vset.pattern.permute.xlu0 0
  %721 = vperm.xlu0 %720, %v713
  %v722 = vpop.permute.xlu0 %721
  %v724 = vadd.f32 %v710, %v717
  %v725 = vadd.f32 %v711, %v722
  %v726 = vmax.f32 %v724, 0.0
  %v727 = vmax.f32 %v725, 0.0
  %728 = vst [vmem:[%s3] sm:$0xff] %v726
  %729 = vst [vmem:[%s3 + $0x8] sm:$0xff] %v727
  // Predicated region
  $region14: #{convnet_forward.4} parent=0 // pred_check
    _
  $region15: #{convnet_forward.4} parent=0 // pred_check_branch
    %731 = sbr.rel (0) target = $region17
  $region16: #{convnet_forward.4} parent=0 // pred_region
    _
  $region17: #{convnet_forward.4} parent=0 // pred_fallthru
    _
  // Predicated region
  $region18: #{convnet_forward.4} parent=0 // pred_check
    _
  $region19: #{convnet_forward.4} parent=0 // pred_check_branch
    %733 = sbr.rel (0) target = $region21
  $region20: #{convnet_forward.4} parent=0 // pred_region
    _
  $region21: #{convnet_forward.4} parent=0 // pred_fallthru
    _

// kernel: convnet_forward.5
$region0: #{convnet_forward.5}
  #allocation0 [shape = 'u32[]', space=smem, size = 0x4, offset = 0x4, fixed_abs, tag = 'smem constant byte address 0x4 - core index']
  #allocation1 [shape = 'u32[144,128]{1,0:T(1,128)}', space=vmem, size = 0x12000, scoped, tag = 'internal scratch']
  %s0 = inlined_call_operand.vmem [shape: bf16[128,384], index: 0, kind: input, shape index: {}]
  %s1 = inlined_call_operand.vmem [shape: f32[128,1], index: 1, kind: input, shape index: {}]
  %s2 = inlined_call_operand.vmem [shape: bf16[16,128], index: 2, kind: input, shape index: {}]
  %s3 = inlined_call_operand.vmem [shape: f32[16,1], index: 3, kind: input, shape index: {}]
  %s4 = inlined_call_operand.vmem [shape: bf16[384,8], index: 4, kind: input, shape index: {}]
  %s5 = inlined_call_operand.vmem [shape: f32[16,8], index: 5, kind: output, shape index: {}]
  %s6 = sld [smem:[#allocation0]]
  $region30: #{convnet_forward.5} parent=0
    _
  %s8 = ssub.s32 1, %s6
  %s9 = scalar_select 0, %s8, %s6
  // Predicated region
  $region2: #{convnet_forward.5} parent=0 // pred_check
    _
  $region3: #{convnet_forward.5} parent=0 // pred_check_branch
    %11 = sbr.rel (0) target = $region5
  $region4: #{convnet_forward.5} parent=0 // pred_region
    _
  $region5: #{convnet_forward.5} parent=0 // pred_fallthru
    _
  // Predicated region
  $region6: #{convnet_forward.5} parent=0 // pred_check
    _
  $region7: #{convnet_forward.5} parent=0 // pred_check_branch
    %13 = sbr.rel (0) target = $region9
  $region8: #{convnet_forward.5} parent=0 // pred_region
    _
  $region9: #{convnet_forward.5} parent=0 // pred_fallthru
    _
  // Predicated region
  $region10: #{convnet_forward.5} parent=0 // pred_check
    _
  $region11: #{convnet_forward.5} parent=0 // pred_check_branch
    %15 = sbr.rel (0) target = $region13
  $region12: #{convnet_forward.5} parent=0 // pred_region
    _
  $region13: #{convnet_forward.5} parent=0 // pred_fallthru
    _
  // Predicated region
  $region14: #{convnet_forward.5} parent=0 // pred_check
    _
  $region15: #{convnet_forward.5} parent=0 // pred_check_branch
    %17 = sbr.rel (0) target = $region17
  $region16: #{convnet_forward.5} parent=0 // pred_region
    _
  $region17: #{convnet_forward.5} parent=0 // pred_fallthru
    _
  // Predicated region
  $region18: #{convnet_forward.5} parent=0 // pred_check
    _
  $region19: #{convnet_forward.5} parent=0 // pred_check_branch
    %19 = sbr.rel (0) target = $region21
  $region20: #{convnet_forward.5} parent=0 // pred_region
    _
  $region21: #{convnet_forward.5} parent=0 // pred_fallthru
    _
  %v21 = vld [vmem:[%s0] sm:$0xff]
  %v22 = vld [vmem:[%s0 + $0x8] sm:$0xf]
  %v23 = vld [vmem:[%s0 + $0xc] sm:$0xff]
  %v24 = vld [vmem:[%s0 + $0x14] sm:$0xf]
  %v25 = vld [vmem:[%s0 + $0x18] sm:$0xff]
  %v26 = vld [vmem:[%s0 + $0x20] sm:$0xf]
  %v27 = vld [vmem:[%s0 + $0x24] sm:$0xff]
  %v28 = vld [vmem:[%s0 + $0x2c] sm:$0xf]
  %v29 = vld [vmem:[%s0 + $0x30] sm:$0xff]
  %v30 = vld [vmem:[%s0 + $0x38] sm:$0xf]
  %v31 = vld [vmem:[%s0 + $0x3c] sm:$0xff]
  %v32 = vld [vmem:[%s0 + $0x44] sm:$0xf]
  %v33 = vld [vmem:[%s0 + $0x48] sm:$0xff]
  %v34 = vld [vmem:[%s0 + $0x50] sm:$0xf]
  %v35 = vld [vmem:[%s0 + $0x54] sm:$0xff]
  %v36 = vld [vmem:[%s0 + $0x5c] sm:$0xf]
  %v37 = vld [vmem:[%s0 + $0x60] sm:$0xff]
  %v38 = vld [vmem:[%s0 + $0x68] sm:$0xf]
  %v39 = vld [vmem:[%s0 + $0x6c] sm:$0xff]
  %v40 = vld [vmem:[%s0 + $0x74] sm:$0xf]
  %v41 = vld [vmem:[%s0 + $0x78] sm:$0xff]
  %v42 = vld [vmem:[%s0 + $0x80] sm:$0xf]
  %v43 = vld [vmem:[%s0 + $0x84] sm:$0xff]
  %v44 = vld [vmem:[%s0 + $0x8c] sm:$0xf]
  %v45 = vld [vmem:[%s0 + $0x90] sm:$0xff]
  %v46 = vld [vmem:[%s0 + $0x98] sm:$0xf]
  %v47 = vld [vmem:[%s0 + $0x9c] sm:$0xff]
  %v48 = vld [vmem:[%s0 + $0xa4] sm:$0xf]
  %v49 = vld [vmem:[%s0 + $0xa8] sm:$0xff]
  %v50 = vld [vmem:[%s0 + $0xb0] sm:$0xf]
  %v51 = vld [vmem:[%s0 + $0xb4] sm:$0xff]
  %v52 = vld [vmem:[%s0 + $0xbc] sm:$0xf]
  %v53 = vld [vmem:[%s4] sm:$0xf]
  %v54 = vld [vmem:[%s4 + $0x4] sm:$0xf]
  %v55 = vld [vmem:[%s4 + $0x8] sm:$0xf]
  %v56 = vld [vmem:[%s4 + $0xc] sm:$0xf]
  %v57 = vld [vmem:[%s4 + $0x10] sm:$0xf]
  %v58 = vld [vmem:[%s4 + $0x14] sm:$0xf]
  %v59 = vld [vmem:[%s4 + $0x18] sm:$0xf]
  %v60 = vld [vmem:[%s4 + $0x1c] sm:$0xf]
  %v61 = vld [vmem:[%s4 + $0x20] sm:$0xf]
  %v62 = vld [vmem:[%s4 + $0x24] sm:$0xf]
  %v63 = vld [vmem:[%s4 + $0x28] sm:$0xf]
  %v64 = vld [vmem:[%s4 + $0x2c] sm:$0xf]
  %v65 = vld [vmem:[%s4 + $0x30] sm:$0xf]
  %v66 = vld [vmem:[%s4 + $0x34] sm:$0xf]
  %v67 = vld [vmem:[%s4 + $0x38] sm:$0xf]
  %v68 = vld [vmem:[%s4 + $0x3c] sm:$0xf]
  %v69 = vld [vmem:[%s4 + $0x40] sm:$0xf]
  %v70 = vld [vmem:[%s4 + $0x44] sm:$0xf]
  %v71 = vld [vmem:[%s4 + $0x48] sm:$0xf]
  %v72 = vld [vmem:[%s4 + $0x4c] sm:$0xf]
  %v73 = vld [vmem:[%s4 + $0x50] sm:$0xf]
  %v74 = vld [vmem:[%s4 + $0x54] sm:$0xf]
  %v75 = vld [vmem:[%s4 + $0x58] sm:$0xf]
  %v76 = vld [vmem:[%s4 + $0x5c] sm:$0xf]
  %v77 = vld [vmem:[%s4 + $0x60] sm:$0xf]
  %v78 = vld [vmem:[%s4 + $0x64] sm:$0xf]
  %v79 = vld [vmem:[%s4 + $0x68] sm:$0xf]
  %v80 = vld [vmem:[%s4 + $0x6c] sm:$0xf]
  %v81 = vld [vmem:[%s4 + $0x70] sm:$0xf]
  %v82 = vld [vmem:[%s4 + $0x74] sm:$0xf]
  %v83 = vld [vmem:[%s4 + $0x78] sm:$0xf]
  %v84 = vld [vmem:[%s4 + $0x7c] sm:$0xf]
  %v85 = vld [vmem:[%s4 + $0x80] sm:$0xf]
  %v86 = vld [vmem:[%s4 + $0x84] sm:$0xf]
  %v87 = vld [vmem:[%s4 + $0x88] sm:$0xf]
  %v88 = vld [vmem:[%s4 + $0x8c] sm:$0xf]
  %v89 = vld [vmem:[%s4 + $0x90] sm:$0xf]
  %v90 = vld [vmem:[%s4 + $0x94] sm:$0xf]
  %v91 = vld [vmem:[%s4 + $0x98] sm:$0xf]
  %v92 = vld [vmem:[%s4 + $0x9c] sm:$0xf]
  %v93 = vld [vmem:[%s4 + $0xa0] sm:$0xf]
  %v94 = vld [vmem:[%s4 + $0xa4] sm:$0xf]
  %v95 = vld [vmem:[%s4 + $0xa8] sm:$0xf]
  %v96 = vld [vmem:[%s4 + $0xac] sm:$0xf]
  %v97 = vld [vmem:[%s4 + $0xb0] sm:$0xf]
  %v98 = vld [vmem:[%s4 + $0xb4] sm:$0xf]
  %v99 = vld [vmem:[%s4 + $0xb8] sm:$0xf]
  %v100 = vld [vmem:[%s4 + $0xbc] sm:$0xf]
  %v101 = vld [vmem:[%s1] sm:$0xff]
  %v102 = vld [vmem:[%s1 + $0x8] sm:$0xff]
  %v103 = vld [vmem:[%s1 + $0x10] sm:$0xff]
  %v104 = vld [vmem:[%s1 + $0x18] sm:$0xff]
  %v105 = vld [vmem:[%s1 + $0x20] sm:$0xff]
  %v106 = vld [vmem:[%s1 + $0x28] sm:$0xff]
  %v107 = vld [vmem:[%s1 + $0x30] sm:$0xff]
  %v108 = vld [vmem:[%s1 + $0x38] sm:$0xff]
  %v109 = vld [vmem:[%s1 + $0x40] sm:$0xff]
  %v110 = vld [vmem:[%s1 + $0x48] sm:$0xff]
  %v111 = vld [vmem:[%s1 + $0x50] sm:$0xff]
  %v112 = vld [vmem:[%s1 + $0x58] sm:$0xff]
  %v113 = vld [vmem:[%s1 + $0x60] sm:$0xff]
  %v114 = vld [vmem:[%s1 + $0x68] sm:$0xff]
  %v115 = vld [vmem:[%s1 + $0x70] sm:$0xff]
  %v116 = vld [vmem:[%s1 + $0x78] sm:$0xff]
  %118 = vset.pattern.permute.xlu0 0
  %119 = vperm.xlu0 %118, %v101
  %v120 = vpop.permute.xlu0 %119
  %123 = vset.pattern.permute.xlu0 0
  %124 = vperm.xlu0 %123, %v102
  %v125 = vpop.permute.xlu0 %124
  %128 = vset.pattern.permute.xlu0 0
  %129 = vperm.xlu0 %128, %v103
  %v130 = vpop.permute.xlu0 %129
  %133 = vset.pattern.permute.xlu0 0
  %134 = vperm.xlu0 %133, %v104
  %v135 = vpop.permute.xlu0 %134
  %138 = vset.pattern.permute.xlu0 0
  %139 = vperm.xlu0 %138, %v105
  %v140 = vpop.permute.xlu0 %139
  %143 = vset.pattern.permute.xlu0 0
  %144 = vperm.xlu0 %143, %v106
  %v145 = vpop.permute.xlu0 %144
  %148 = vset.pattern.permute.xlu0 0
  %149 = vperm.xlu0 %148, %v107
  %v150 = vpop.permute.xlu0 %149
  %153 = vset.pattern.permute.xlu0 0
  %154 = vperm.xlu0 %153, %v108
  %v155 = vpop.permute.xlu0 %154
  %158 = vset.pattern.permute.xlu0 0
  %159 = vperm.xlu0 %158, %v109
  %v160 = vpop.permute.xlu0 %159
  %163 = vset.pattern.permute.xlu0 0
  %164 = vperm.xlu0 %163, %v110
  %v165 = vpop.permute.xlu0 %164
  %168 = vset.pattern.permute.xlu0 0
  %169 = vperm.xlu0 %168, %v111
  %v170 = vpop.permute.xlu0 %169
  %173 = vset.pattern.permute.xlu0 0
  %174 = vperm.xlu0 %173, %v112
  %v175 = vpop.permute.xlu0 %174
  %178 = vset.pattern.permute.xlu0 0
  %179 = vperm.xlu0 %178, %v113
  %v180 = vpop.permute.xlu0 %179
  %183 = vset.pattern.permute.xlu0 0
  %184 = vperm.xlu0 %183, %v114
  %v185 = vpop.permute.xlu0 %184
  %188 = vset.pattern.permute.xlu0 0
  %189 = vperm.xlu0 %188, %v115
  %v190 = vpop.permute.xlu0 %189
  %193 = vset.pattern.permute.xlu0 0
  %194 = vperm.xlu0 %193, %v116
  %v195 = vpop.permute.xlu0 %194
  %v229 = vunpack.c.l.b16 %v21
  %v230 = vunpack.c.h.b16 %v21
  %v231 = vunpack.c.l.b16 %v22
  %v232 = vunpack.c.l.b16 %v23
  %v233 = vunpack.c.h.b16 %v23
  %v234 = vunpack.c.l.b16 %v24
  %v235 = vunpack.c.l.b16 %v25
  %v236 = vunpack.c.h.b16 %v25
  %v237 = vunpack.c.l.b16 %v26
  %v238 = vunpack.c.l.b16 %v27
  %v239 = vunpack.c.h.b16 %v27
  %v240 = vunpack.c.l.b16 %v28
  %v241 = vunpack.c.l.b16 %v29
  %v242 = vunpack.c.h.b16 %v29
  %v243 = vunpack.c.l.b16 %v30
  %v244 = vunpack.c.l.b16 %v31
  %v245 = vunpack.c.h.b16 %v31
  %v246 = vunpack.c.l.b16 %v32
  %v247 = vunpack.c.l.b16 %v33
  %v248 = vunpack.c.h.b16 %v33
  %v249 = vunpack.c.l.b16 %v34
  %v250 = vunpack.c.l.b16 %v35
  %v251 = vunpack.c.h.b16 %v35
  %v252 = vunpack.c.l.b16 %v36
  %v253 = vunpack.c.l.b16 %v37
  %v254 = vunpack.c.h.b16 %v37
  %v255 = vunpack.c.l.b16 %v38
  %v256 = vunpack.c.l.b16 %v39
  %v257 = vunpack.c.h.b16 %v39
  %v258 = vunpack.c.l.b16 %v40
  %v259 = vunpack.c.l.b16 %v41
  %v260 = vunpack.c.h.b16 %v41
  %v261 = vunpack.c.l.b16 %v42
  %v262 = vunpack.c.l.b16 %v43
  %v263 = vunpack.c.h.b16 %v43
  %v264 = vunpack.c.l.b16 %v44
  %v265 = vunpack.c.l.b16 %v45
  %v266 = vunpack.c.h.b16 %v45
  %v267 = vunpack.c.l.b16 %v46
  %v268 = vunpack.c.l.b16 %v47
  %v269 = vunpack.c.h.b16 %v47
  %v270 = vunpack.c.l.b16 %v48
  %v271 = vunpack.c.l.b16 %v49
  %v272 = vunpack.c.h.b16 %v49
  %v273 = vunpack.c.l.b16 %v50
  %v274 = vunpack.c.l.b16 %v51
  %v275 = vunpack.c.h.b16 %v51
  %v276 = vunpack.c.l.b16 %v52
  %v277 = vpack.c.b16 %v232, %v229
  %v278 = vpack.c.b16 %v233, %v230
  %v279 = vpack.c.b16 %v234, %v231
  %v280 = vpack.c.b16 %v238, %v235
  %v281 = vpack.c.b16 %v239, %v236
  %v282 = vpack.c.b16 %v240, %v237
  %v283 = vpack.c.b16 %v244, %v241
  %v284 = vpack.c.b16 %v245, %v242
  %v285 = vpack.c.b16 %v246, %v243
  %v286 = vpack.c.b16 %v250, %v247
  %v287 = vpack.c.b16 %v251, %v248
  %v288 = vpack.c.b16 %v252, %v249
  %v289 = vpack.c.b16 %v256, %v253
  %v290 = vpack.c.b16 %v257, %v254
  %v291 = vpack.c.b16 %v258, %v255
  %v292 = vpack.c.b16 %v262, %v259
  %v293 = vpack.c.b16 %v263, %v260
  %v294 = vpack.c.b16 %v264, %v261
  %v295 = vpack.c.b16 %v268, %v265
  %v296 = vpack.c.b16 %v269, %v266
  %v297 = vpack.c.b16 %v270, %v267
  %v298 = vpack.c.b16 %v274, %v271
  %v299 = vpack.c.b16 %v275, %v272
  %v300 = vpack.c.b16 %v276, %v273
  %v373 = vunpack.c.l.b16 %v53
  %v374 = vunpack.c.l.b16 %v54
  %v375 = vunpack.c.l.b16 %v55
  %v376 = vunpack.c.l.b16 %v56
  %v377 = vunpack.c.l.b16 %v57
  %v378 = vunpack.c.l.b16 %v58
  %v379 = vunpack.c.l.b16 %v59
  %v380 = vunpack.c.l.b16 %v60
  %v381 = vunpack.c.l.b16 %v61
  %v382 = vunpack.c.l.b16 %v62
  %v383 = vunpack.c.l.b16 %v63
  %v384 = vunpack.c.l.b16 %v64
  %v385 = vunpack.c.l.b16 %v65
  %v386 = vunpack.c.l.b16 %v66
  %v387 = vunpack.c.l.b16 %v67
  %v388 = vunpack.c.l.b16 %v68
  %v389 = vunpack.c.l.b16 %v69
  %v390 = vunpack.c.l.b16 %v70
  %v391 = vunpack.c.l.b16 %v71
  %v392 = vunpack.c.l.b16 %v72
  %v393 = vunpack.c.l.b16 %v73
  %v394 = vunpack.c.l.b16 %v74
  %v395 = vunpack.c.l.b16 %v75
  %v396 = vunpack.c.l.b16 %v76
  %v397 = vunpack.c.l.b16 %v77
  %v398 = vunpack.c.l.b16 %v78
  %v399 = vunpack.c.l.b16 %v79
  %v400 = vunpack.c.l.b16 %v80
  %v401 = vunpack.c.l.b16 %v81
  %v402 = vunpack.c.l.b16 %v82
  %v403 = vunpack.c.l.b16 %v83
  %v404 = vunpack.c.l.b16 %v84
  %v405 = vunpack.c.l.b16 %v85
  %v406 = vunpack.c.l.b16 %v86
  %v407 = vunpack.c.l.b16 %v87
  %v408 = vunpack.c.l.b16 %v88
  %v409 = vunpack.c.l.b16 %v89
  %v410 = vunpack.c.l.b16 %v90
  %v411 = vunpack.c.l.b16 %v91
  %v412 = vunpack.c.l.b16 %v92
  %v413 = vunpack.c.l.b16 %v93
  %v414 = vunpack.c.l.b16 %v94
  %v415 = vunpack.c.l.b16 %v95
  %v416 = vunpack.c.l.b16 %v96
  %v417 = vunpack.c.l.b16 %v97
  %v418 = vunpack.c.l.b16 %v98
  %v419 = vunpack.c.l.b16 %v99
  %v420 = vunpack.c.l.b16 %v100
  %v421 = vpack.c.b16 %v374, %v373
  %v422 = vpack.c.b16 %v376, %v375
  %v423 = vpack.c.b16 %v378, %v377
  %v424 = vpack.c.b16 %v380, %v379
  %v425 = vpack.c.b16 %v382, %v381
  %v426 = vpack.c.b16 %v384, %v383
  %v427 = vpack.c.b16 %v386, %v385
  %v428 = vpack.c.b16 %v388, %v387
  %v429 = vpack.c.b16 %v390, %v389
  %v430 = vpack.c.b16 %v392, %v391
  %v431 = vpack.c.b16 %v394, %v393
  %v432 = vpack.c.b16 %v396, %v395
  %v433 = vpack.c.b16 %v398, %v397
  %v434 = vpack.c.b16 %v400, %v399
  %v435 = vpack.c.b16 %v402, %v401
  %v436 = vpack.c.b16 %v404, %v403
  %v437 = vpack.c.b16 %v406, %v405
  %v438 = vpack.c.b16 %v408, %v407
  %v439 = vpack.c.b16 %v410, %v409
  %v440 = vpack.c.b16 %v412, %v411
  %v441 = vpack.c.b16 %v414, %v413
  %v442 = vpack.c.b16 %v416, %v415
  %v443 = vpack.c.b16 %v418, %v417
  %v444 = vpack.c.b16 %v420, %v419
  %469 = vmatprep.subr.bf16.mxu0 0
  %470 = vmatpush1.bf16.msra.mxu0 %v421
  %471 = vmatprep.subr.bf16.mxu0 0
  %472 = vmatpush1.bf16.msra.mxu0 %v422
  %473 = vmatprep.subr.bf16.mxu0 0
  %474 = vmatpush1.bf16.msra.mxu0 %v423
  %475 = vmatprep.subr.bf16.mxu0 0
  %476 = vmatpush1.bf16.msra.mxu0 %v424
  %477 = vmatprep.subr.bf16.mxu0 0
  %478 = vmatpush1.bf16.msra.mxu0 %v425
  %479 = vmatprep.subr.bf16.mxu0 0
  %480 = vmatpush1.bf16.msra.mxu0 %v426
  %481 = vmatprep.subr.bf16.mxu0 0
  %482 = vmatpush1.bf16.msra.mxu0 %v427
  %483 = vmatprep.subr.bf16.mxu0 0
  %484 = vmatpush1.bf16.msra.mxu0 %v428
  %485 = vmatprep.subr.bf16.mxu0 0
  %486 = vmatpush1.bf16.msra.mxu0 %v429
  %487 = vmatprep.subr.bf16.mxu0 0
  %488 = vmatpush1.bf16.msra.mxu0 %v430
  %489 = vmatprep.subr.bf16.mxu0 0
  %490 = vmatpush1.bf16.msra.mxu0 %v431
  %491 = vmatprep.subr.bf16.mxu0 0
  %492 = vmatpush1.bf16.msra.mxu0 %v432
  %493 = vmatprep.subr.bf16.mxu0 0
  %494 = vmatpush1.bf16.msra.mxu0 %v433
  %495 = vmatprep.subr.bf16.mxu0 0
  %496 = vmatpush1.bf16.msra.mxu0 %v434
  %497 = vmatprep.subr.bf16.mxu0 0
  %498 = vmatpush1.bf16.msra.mxu0 %v435
  %499 = vmatprep.subr.bf16.mxu0 0
  %500 = vmatpush1.bf16.msra.mxu0 %v436
  %501 = vmatprep.mubr.bf16.mxu0 %v278
  %502 = vmatmul.mubr.bf16.gmra.mrb[0].mxu0 %v277
  %v503 = vpop.f32.mrb[0].mxu0
  %v504 = vadd.f32 %v120, %v503
  %v505 = vpop.f32.mrb[0].mxu0
  %v506 = vpop.f32.mrb[0].mxu0
  %v507 = vadd.f32 %v125, %v506
  %v508 = vpop.f32.mrb[0].mxu0
  %509 = vmatprep.mubr.bf16.mxu0 %v281
  %510 = vmatmul.mubr.bf16.gmra.mrb[0].mxu0 %v280
  %v511 = vpop.f32.mrb[0].mxu0
  %v512 = vadd.f32 %v130, %v511
  %v513 = vpop.f32.mrb[0].mxu0
  %v514 = vpop.f32.mrb[0].mxu0
  %v515 = vadd.f32 %v135, %v514
  %v516 = vpop.f32.mrb[0].mxu0
  %517 = vmatprep.mubr.bf16.mxu0 %v284
  %518 = vmatmul.mubr.bf16.gmra.mrb[0].mxu0 %v283
  %v519 = vpop.f32.mrb[0].mxu0
  %v520 = vadd.f32 %v140, %v519
  %v521 = vpop.f32.mrb[0].mxu0
  %v522 = vpop.f32.mrb[0].mxu0
  %v523 = vadd.f32 %v145, %v522
  %v524 = vpop.f32.mrb[0].mxu0
  %525 = vmatprep.mubr.bf16.mxu0 %v287
  %526 = vmatmul.mubr.bf16.gmra.mrb[0].mxu0 %v286
  %v527 = vpop.f32.mrb[0].mxu0
  %v528 = vadd.f32 %v150, %v527
  %v529 = vpop.f32.mrb[0].mxu0
  %v530 = vpop.f32.mrb[0].mxu0
  %v531 = vadd.f32 %v155, %v530
  %v532 = vpop.f32.mrb[0].mxu0
  %533 = vmatprep.mubr.bf16.mxu0 %v290
  %534 = vmatmul.mubr.bf16.gmra.mrb[0].mxu0 %v289
  %v535 = vpop.f32.mrb[0].mxu0
  %v536 = vadd.f32 %v160, %v535
  %v537 = vpop.f32.mrb[0].mxu0
  %v538 = vpop.f32.mrb[0].mxu0
  %v539 = vadd.f32 %v165, %v538
  %v540 = vpop.f32.mrb[0].mxu0
  %541 = vmatprep.mubr.bf16.mxu0 %v293
  %542 = vmatmul.mubr.bf16.gmra.mrb[0].mxu0 %v292
  %v543 = vpop.f32.mrb[0].mxu0
  %v544 = vadd.f32 %v170, %v543
  %v545 = vpop.f32.mrb[0].mxu0
  %v546 = vpop.f32.mrb[0].mxu0
  %v547 = vadd.f32 %v175, %v546
  %v548 = vpop.f32.mrb[0].mxu0
  %549 = vmatprep.mubr.bf16.mxu0 %v296
  %550 = vmatmul.mubr.bf16.gmra.mrb[0].mxu0 %v295
  %v551 = vpop.f32.mrb[0].mxu0
  %v552 = vadd.f32 %v180, %v551
  %v553 = vpop.f32.mrb[0].mxu0
  %v554 = vpop.f32.mrb[0].mxu0
  %v555 = vadd.f32 %v185, %v554
  %v556 = vpop.f32.mrb[0].mxu0
  %557 = vmatprep.mubr.bf16.mxu0 %v299
  %558 = vmatmul.mubr.bf16.gmra.mrb[0].mxu0 %v298
  %v559 = vpop.f32.mrb[0].mxu0
  %v560 = vadd.f32 %v190, %v559
  %v561 = vpop.f32.mrb[0].mxu0
  %v562 = vpop.f32.mrb[0].mxu0
  %v563 = vadd.f32 %v195, %v562
  %v564 = vpop.f32.mrb[0].mxu0
  %565 = vdwg.mxu0
  %566 = vmatprep.subr.bf16.mxu0 0
  %567 = vmatpush1.bf16.msra.mxu0 %v437
  %568 = vmatprep.subr.bf16.mxu0 0
  %569 = vmatpush1.bf16.msra.mxu0 %v438
  %570 = vmatprep.subr.bf16.mxu0 0
  %571 = vmatpush1.bf16.msra.mxu0 %v439
  %572 = vmatprep.subr.bf16.mxu0 0
  %573 = vmatpush1.bf16.msra.mxu0 %v440
  %574 = vmatprep.subr.bf16.mxu0 0
  %575 = vmatpush1.bf16.msra.mxu0 %v441
  %576 = vmatprep.subr.bf16.mxu0 0
  %577 = vmatpush1.bf16.msra.mxu0 %v442
  %578 = vmatprep.subr.bf16.mxu0 0
  %579 = vmatpush1.bf16.msra.mxu0 %v443
  %580 = vmatprep.subr.bf16.mxu0 0
  %581 = vmatpush1.bf16.msra.mxu0 %v444
  %582 = vmatprep.subr.bf16.mxu0 0
  %583 = vmatpush1.bf16.msra.mxu0 0
  %584 = vmatprep.subr.bf16.mxu0 0
  %585 = vmatpush1.bf16.msra.mxu0 0
  %586 = vmatprep.subr.bf16.mxu0 0
  %587 = vmatpush1.bf16.msra.mxu0 0
  %588 = vmatprep.subr.bf16.mxu0 0
  %589 = vmatpush1.bf16.msra.mxu0 0
  %590 = vmatprep.subr.bf16.mxu0 0
  %591 = vmatpush1.bf16.msra.mxu0 0
  %592 = vmatprep.subr.bf16.mxu0 0
  %593 = vmatpush1.bf16.msra.mxu0 0
  %594 = vmatprep.subr.bf16.mxu0 0
  %595 = vmatpush1.bf16.msra.mxu0 0
  %596 = vmatprep.subr.bf16.mxu0 0
  %597 = vmatpush1.bf16.msra.mxu0 0
  %598 = vmatprep.mubr.bf16.mxu0 0
  %599 = vmatmul.mubr.bf16.gmra.mrb[0].mxu0 %v279
  %v600 = vpop.f32.mrb[0].mxu0
  %v601 = vadd.f32 %v504, %v600
  %v602 = vpop.f32.mrb[0].mxu0
  %v603 = vpop.f32.mrb[0].mxu0
  %v604 = vadd.f32 %v507, %v603
  %v605 = vpop.f32.mrb[0].mxu0
  %606 = vmatprep.mubr.bf16.mxu0 0
  %607 = vmatmul.mubr.bf16.gmra.mrb[0].mxu0 %v282
  %v608 = vpop.f32.mrb[0].mxu0
  %v609 = vadd.f32 %v512, %v608
  %v610 = vpop.f32.mrb[0].mxu0
  %v611 = vpop.f32.mrb[0].mxu0
  %v612 = vadd.f32 %v515, %v611
  %v613 = vpop.f32.mrb[0].mxu0
  %614 = vmatprep.mubr.bf16.mxu0 0
  %615 = vmatmul.mubr.bf16.gmra.mrb[0].mxu0 %v285
  %v616 = vpop.f32.mrb[0].mxu0
  %v617 = vadd.f32 %v520, %v616
  %v618 = vpop.f32.mrb[0].mxu0
  %v619 = vpop.f32.mrb[0].mxu0
  %v620 = vadd.f32 %v523, %v619
  %v621 = vpop.f32.mrb[0].mxu0
  %622 = vmatprep.mubr.bf16.mxu0 0
  %623 = vmatmul.mubr.bf16.gmra.mrb[0].mxu0 %v288
  %v624 = vpop.f32.mrb[0].mxu0
  %v625 = vadd.f32 %v528, %v624
  %v626 = vpop.f32.mrb[0].mxu0
  %v627 = vpop.f32.mrb[0].mxu0
  %v628 = vadd.f32 %v531, %v627
  %v629 = vpop.f32.mrb[0].mxu0
  %630 = vmatprep.mubr.bf16.mxu0 0
  %631 = vmatmul.mubr.bf16.gmra.mrb[0].mxu0 %v291
  %v632 = vpop.f32.mrb[0].mxu0
  %v633 = vadd.f32 %v536, %v632
  %v634 = vpop.f32.mrb[0].mxu0
  %v635 = vpop.f32.mrb[0].mxu0
  %v636 = vadd.f32 %v539, %v635
  %v637 = vpop.f32.mrb[0].mxu0
  %638 = vmatprep.mubr.bf16.mxu0 0
  %639 = vmatmul.mubr.bf16.gmra.mrb[0].mxu0 %v294
  %v640 = vpop.f32.mrb[0].mxu0
  %v641 = vadd.f32 %v544, %v640
  %v642 = vpop.f32.mrb[0].mxu0
  %v643 = vpop.f32.mrb[0].mxu0
  %v644 = vadd.f32 %v547, %v643
  %v645 = vpop.f32.mrb[0].mxu0
  %646 = vmatprep.mubr.bf16.mxu0 0
  %647 = vmatmul.mubr.bf16.gmra.mrb[0].mxu0 %v297
  %v648 = vpop.f32.mrb[0].mxu0
  %v649 = vadd.f32 %v552, %v648
  %v650 = vpop.f32.mrb[0].mxu0
  %v651 = vpop.f32.mrb[0].mxu0
  %v652 = vadd.f32 %v555, %v651
  %v653 = vpop.f32.mrb[0].mxu0
  %654 = vmatprep.mubr.bf16.mxu0 0
  %655 = vmatmul.mubr.bf16.gmra.mrb[0].mxu0 %v300
  %v656 = vpop.f32.mrb[0].mxu0
  %v657 = vadd.f32 %v560, %v656
  %v658 = vpop.f32.mrb[0].mxu0
  %v659 = vpop.f32.mrb[0].mxu0
  %v660 = vadd.f32 %v563, %v659
  %v661 = vpop.f32.mrb[0].mxu0
  %662 = vdwg.mxu0
  %v663 = vmax.f32 %v601, 0.0
  %v664 = vmax.f32 %v604, 0.0
  %v665 = vmax.f32 %v609, 0.0
  %v666 = vmax.f32 %v612, 0.0
  %v667 = vmax.f32 %v617, 0.0
  %v668 = vmax.f32 %v620, 0.0
  %v669 = vmax.f32 %v625, 0.0
  %v670 = vmax.f32 %v628, 0.0
  %v671 = vmax.f32 %v633, 0.0
  %v672 = vmax.f32 %v636, 0.0
  %v673 = vmax.f32 %v641, 0.0
  %v674 = vmax.f32 %v644, 0.0
  %v675 = vmax.f32 %v649, 0.0
  %v676 = vmax.f32 %v652, 0.0
  %v677 = vmax.f32 %v657, 0.0
  %v678 = vmax.f32 %v660, 0.0
  %v679 = vld [vmem:[%s2] sm:$0xf]
  %v680 = vld [vmem:[%s2 + $0x4] sm:$0xf]
  %v681 = vpack.c.bf16 %v664, %v663
  %v682 = vpack.c.bf16 %v666, %v665
  %v683 = vpack.c.bf16 %v668, %v667
  %v684 = vpack.c.bf16 %v670, %v669
  %v685 = vpack.c.bf16 %v672, %v671
  %v686 = vpack.c.bf16 %v674, %v673
  %v687 = vpack.c.bf16 %v676, %v675
  %v688 = vpack.c.bf16 %v678, %v677
  %v689 = vld [vmem:[%s3] sm:$0xff]
  %v690 = vld [vmem:[%s3 + $0x8] sm:$0xff]
  %692 = vset.pattern.permute.xlu0 0
  %693 = vperm.xlu0 %692, %v689
  %v694 = vpop.permute.xlu0 %693
  %697 = vset.pattern.permute.xlu0 0
  %698 = vperm.xlu0 %697, %v690
  %v699 = vpop.permute.xlu0 %698
  %v703 = vunpack.c.l.b16 %v679
  %v704 = vunpack.c.l.b16 %v680
  %v705 = vpack.c.b16 %v704, %v703
  %707 = vmatprep.subr.bf16.mxu0 0
  %708 = vmatpush1.bf16.msra.mxu0 %v681
  %709 = vmatprep.subr.bf16.mxu0 0
  %710 = vmatpush1.bf16.msra.mxu0 %v682
  %711 = vmatprep.subr.bf16.mxu0 0
  %712 = vmatpush1.bf16.msra.mxu0 %v683
  %713 = vmatprep.subr.bf16.mxu0 0
  %714 = vmatpush1.bf16.msra.mxu0 %v684
  %715 = vmatprep.subr.bf16.mxu0 0
  %716 = vmatpush1.bf16.msra.mxu0 %v685
  %717 = vmatprep.subr.bf16.mxu0 0
  %718 = vmatpush1.bf16.msra.mxu0 %v686
  %719 = vmatprep.subr.bf16.mxu0 0
  %720 = vmatpush1.bf16.msra.mxu0 %v687
  %721 = vmatprep.subr.bf16.mxu0 0
  %722 = vmatpush1.bf16.msra.mxu0 %v688
  %723 = vmatprep.subr.bf16.mxu0 0
  %724 = vmatpush1.bf16.msra.mxu0 0
  %725 = vmatprep.subr.bf16.mxu0 0
  %726 = vmatpush1.bf16.msra.mxu0 0
  %727 = vmatprep.subr.bf16.mxu0 0
  %728 = vmatpush1.bf16.msra.mxu0 0
  %729 = vmatprep.subr.bf16.mxu0 0
  %730 = vmatpush1.bf16.msra.mxu0 0
  %731 = vmatprep.subr.bf16.mxu0 0
  %732 = vmatpush1.bf16.msra.mxu0 0
  %733 = vmatprep.subr.bf16.mxu0 0
  %734 = vmatpush1.bf16.msra.mxu0 0
  %735 = vmatprep.subr.bf16.mxu0 0
  %736 = vmatpush1.bf16.msra.mxu0 0
  %737 = vmatprep.subr.bf16.mxu0 0
  %738 = vmatpush1.bf16.msra.mxu0 0
  %739 = vmatprep.mubr.bf16.mxu0 0
  %740 = vmatmul.mubr.bf16.gmra.mrb[0].mxu0 %v705
  %v741 = vpop.f32.mrb[0].mxu0
  %v742 = vadd.f32 %v694, %v741
  %v743 = vpop.f32.mrb[0].mxu0
  %v744 = vpop.f32.mrb[0].mxu0
  %v745 = vadd.f32 %v699, %v744
  %v746 = vpop.f32.mrb[0].mxu0
  %747 = vdwg.mxu0
  %vm748 = vcmask 64512
  %749 = vst.msk [vmem:[%s5] sm:$0xff] %vm748, %v742
  %750 = vst.msk [vmem:[%s5 + $0x8] sm:$0xff] %vm748, %v745
  // Predicated region
  $region22: #{convnet_forward.5} parent=0 // pred_check
    _
  $region23: #{convnet_forward.5} parent=0 // pred_check_branch
    %752 = sbr.rel (0) target = $region25
  $region24: #{convnet_forward.5} parent=0 // pred_region
    _
  $region25: #{convnet_forward.5} parent=0 // pred_fallthru
    _
  // Predicated region
  $region26: #{convnet_forward.5} parent=0 // pred_check
    _
  $region27: #{convnet_forward.5} parent=0 // pred_check_branch
    %754 = sbr.rel (0) target = $region29
  $region28: #{convnet_forward.5} parent=0 // pred_region
    _
  $region29: #{convnet_forward.5} parent=0 // pred_fallthru
    _

</llo_original>
